<compile_context>
chip_gen: v5e
topology: v5e:2x2
jax: 0.10.0
libtpu: 0.0.40
codegen_flags: <defaults>
</compile_context>

<pallas_src>
import math

import jax
import jax.numpy as jnp
from jax import lax
from jax.experimental import pallas as pl
from jax.experimental.pallas import tpu as pltpu

# ----------------------------- config (small, synthetic) ---------------------
HIDDEN = 32
NUM_HEADS = 4
HEAD_DIM = HIDDEN // NUM_HEADS        # 8
MAX_POS = 16                          # max_position_embeddings
ROPE_BASE = 10000.0
BATCH = 2
SEQ = 8
DTYPE = jnp.float32


# ----------------------------- fused kernel ----------------------------------
def _fused_attention_kernel(x_ref, wqkv_ref, wo_ref, cos_ref, sin_ref,
                            mask_ref, cache_hbm_ref, out_ref, kv_out_ref):
    """Whole LlamaAttention forward for the valid_past_index == 0 path.

    x_ref:         (B*S, H)                hidden states
    wqkv_ref:      (H, 3H)                 qkv_proj weight, pre-transposed (in, out)
    wo_ref:        (H, H)                  o_proj weight, pre-transposed (in, out)
    cos_ref:       (B*S, HD)               cos gathered at position_ids
    sin_ref:       (B*S, HD)               sin gathered at position_ids
    mask_ref:      (B, S, S)               additive attention mask (0 / -inf)
    cache_hbm_ref: (2, B, NH, MAX_POS, HD) existing KV cache, left in HBM (unused:
                                           aliased to the output, rows >= S are
                                           preserved in place)
    out_ref:       (B*S, H)                attention output (after o_proj)
    kv_out_ref:    (2, B, NH, S, HD)       cache rows [0, S) being written this call
    """
    del cache_hbm_ref  # never read; alias keeps untouched rows intact

    _, B, NH, S, HD = kv_out_ref.shape
    BS, H = x_ref.shape
    HALF = HD // 2
    scale = 1.0 / math.sqrt(HD)
    neg_min = float(jnp.finfo(jnp.float32).min)

    # fused QKV projection (MXU); result stays in VMEM
    x = x_ref[...]                                                    # (BS, H)
    qkv = jnp.dot(x, wqkv_ref[...],
                  preferred_element_type=jnp.float32)                 # (BS, 3H)

    cos = cos_ref[...]
    sin = sin_ref[...]

    def rope(t, c, s):
        # emb = cat(freqs, freqs) => cos/sin halves are identical, so
        # t*cos + rotate_half(t)*sin == cat(t1*c - t2*s, t2*c + t1*s)
        t1 = t[:, :HALF]
        t2 = t[:, HALF:]
        return jnp.concatenate([t1 * c - t2 * s, t2 * c + t1 * s], axis=-1)

    rows = []
    for b in range(B):                       # statically unrolled (tiny B, NH)
        r0 = b * S
        cos_b = cos[r0:r0 + S, :HALF]                                 # (S, HD/2)
        sin_b = sin[r0:r0 + S, :HALF]
        cos_q = cos_b * scale                # fold 1/sqrt(d) into q's rotation
        sin_q = sin_b * scale
        mask_b = jnp.maximum(mask_ref[b], neg_min)                    # (S, S)

        head_outs = []
        for h in range(NH):
            c0 = h * HD
            q_bh = qkv[r0:r0 + S, c0:c0 + HD]                         # (S, HD)
            k_bh = qkv[r0:r0 + S, H + c0:H + c0 + HD]
            v_bh = qkv[r0:r0 + S, 2 * H + c0:2 * H + c0 + HD]

            q_rope = rope(q_bh, cos_q, sin_q)        # already carries 1/sqrt(d)
            k_rope = rope(k_bh, cos_b, sin_b)

            # KV-cache writeback for rows [0, S): rope'd keys, raw values.
            kv_out_ref[0, b, h, :, :] = k_rope.astype(kv_out_ref.dtype)
            kv_out_ref[1, b, h, :, :] = v_bh.astype(kv_out_ref.dtype)

            # scores: contract last dims of both operands (no k_rope.T relayout)
            scores = lax.dot_general(
                q_rope, k_rope, (((1,), (1,)), ((), ())),
                preferred_element_type=jnp.float32) + mask_b
            m = jnp.max(scores, axis=-1, keepdims=True)
            p = jnp.exp(scores - m)
            denom = jnp.sum(p, axis=-1, keepdims=True)
            o_bh = jnp.dot(p, v_bh, preferred_element_type=jnp.float32)
            o_bh = o_bh * pl.reciprocal(denom, approx=True)
            head_outs.append(o_bh)

        rows.append(jnp.concatenate(head_outs, axis=-1))              # (S, H)

    attn = jnp.concatenate(rows, axis=0)                              # (BS, H)

    # output projection (MXU); write one lane-dense (BS, H) slab
    out_ref[...] = jnp.dot(
        attn, wo_ref[...], preferred_element_type=jnp.float32
    ).astype(out_ref.dtype)


def fused_llama_attention(hidden_states, attention_mask, position_ids,
                          past_key_value, params):
    # TODO(synk): only the valid_past_index == 0 (prefill) path is implemented;
    # the decode path (valid_past_index > 0, dynamic past slicing) is not.
    B, S, H = hidden_states.shape
    NH, HD = NUM_HEADS, HEAD_DIM
    x = hidden_states.reshape(B * S, H)
    cos = params["cos_cached"][position_ids].reshape(B * S, HD)
    sin = params["sin_cached"][position_ids].reshape(B * S, HD)
    mask = attention_mask.reshape(B, S, S)
    cache_shape = past_key_value.shape                  # (2, B, NH, MAX_POS, HD)

    out_flat, new_past = pl.pallas_call(
        _fused_attention_kernel,
        out_shape=(
            jax.ShapeDtypeStruct((B * S, H), hidden_states.dtype),
            jax.ShapeDtypeStruct(cache_shape, past_key_value.dtype),
        ),
        grid=(1,),
        in_specs=[
            pl.BlockSpec((B * S, H), lambda i: (0, 0)),
            pl.BlockSpec((H, 3 * H), lambda i: (0, 0)),
            pl.BlockSpec((H, H), lambda i: (0, 0)),
            pl.BlockSpec((B * S, HD), lambda i: (0, 0)),
            pl.BlockSpec((B * S, HD), lambda i: (0, 0)),
            pl.BlockSpec((B, S, S), lambda i: (0, 0, 0)),
            pl.BlockSpec(memory_space=pl.ANY),   # cache stays in HBM, never read
        ],
        out_specs=(
            pl.BlockSpec((B * S, H), lambda i: (0, 0)),
            # Only cache rows [0, S) are produced; the remaining positions are
            # preserved in place via the input/output alias below.
            pl.BlockSpec((2, B, NH, S, HD), lambda i: (0, 0, 0, 0, 0)),
        ),
        input_output_aliases={6: 1},             # KV cache updated in place
        compiler_params=pltpu.CompilerParams(
            dimension_semantics=("arbitrary",)),
    )(x, params["w_qkv_t"], params["w_o_t"], cos, sin, mask, past_key_value)

    return out_flat.reshape(B, S, H), new_past


# ----------------------------- parameter / buffer setup ----------------------
def init_params(key):
    k1, k2 = jax.random.split(key)
    # nn.Linear weights are (out, in); store them pre-transposed (in, out) so
    # the forward path never pays an XLA transpose.
    w_qkv = jax.random.normal(k1, (3 * HIDDEN, HIDDEN), DTYPE) * 0.02
    w_o = jax.random.normal(k2, (HIDDEN, HIDDEN), DTYPE) * 0.02

    inv_freq = 1.0 / (ROPE_BASE ** (jnp.arange(0, HEAD_DIM, 2, dtype=jnp.float32) / HEAD_DIM))
    t = jnp.arange(MAX_POS, dtype=jnp.float32)
    freqs = jnp.einsum("i,j->ij", t, inv_freq)
    emb = jnp.concatenate([freqs, freqs], axis=-1)
    return {
        "w_qkv_t": w_qkv.T,                                  # (H, 3H)
        "w_o_t": w_o.T,                                      # (H, H)
        "cos_cached": jnp.cos(emb).astype(DTYPE),            # (MAX_POS, HD)
        "sin_cached": jnp.sin(emb).astype(DTYPE),
    }


# ----------------------------- pure-JAX reference -----------------------------
def _rotate_half(x):
    h = x.shape[-1] // 2
    return jnp.concatenate([-x[..., h:], x[..., :h]], axis=-1)


def reference_forward(hidden_states, attention_mask, position_ids,
                      past_key_value, params):
    B, S, H = hidden_states.shape
    qkv = hidden_states @ params["w_qkv_t"]
    qkv = qkv.reshape(B, S, 3, NUM_HEADS, HEAD_DIM).transpose(2, 0, 3, 1, 4)
    q, k, v = qkv[0], qkv[1], qkv[2]
    cos = params["cos_cached"][position_ids][:, None]        # (B, 1, S, HD)
    sin = params["sin_cached"][position_ids][:, None]
    q = q * cos + _rotate_half(q) * sin
    k = k * cos + _rotate_half(k) * sin
    mask = jnp.maximum(attention_mask, jnp.finfo(DTYPE).min)
    scores = jnp.einsum("bhqd,bhkd->bhqk", q, k) / math.sqrt(HEAD_DIM) + mask
    p = jax.nn.softmax(scores, axis=-1)
    o = jnp.einsum("bhqk,bhkd->bhqd", p, v)
    o = o.transpose(0, 2, 1, 3).reshape(B, S, H)
    out = o @ params["w_o_t"]
    kv = jnp.stack([k, v], axis=0)                           # (2, B, NH, S, HD)
    new_past = jax.lax.dynamic_update_slice(past_key_value, kv, (0, 0, 0, 0, 0))
    return out, new_past


# ----------------------------- main -------------------------------------------
if __name__ == "__main__":
    key = jax.random.PRNGKey(0)
    kp, kx = jax.random.split(key)
    params = init_params(kp)

    hidden_states = jax.random.normal(kx, (BATCH, SEQ, HIDDEN), DTYPE)
    position_ids = jnp.broadcast_to(jnp.arange(SEQ, dtype=jnp.int32), (BATCH, SEQ))

    # causal additive attention mask (0 on/below diagonal, -inf above), HF-style
    causal = jnp.tril(jnp.ones((SEQ, SEQ), dtype=bool))
    attention_mask = jnp.where(causal, 0.0, -jnp.inf).astype(DTYPE)[None, None]
    attention_mask = jnp.broadcast_to(attention_mask, (BATCH, 1, SEQ, SEQ))

    past_key_value = jnp.zeros((2, BATCH, NUM_HEADS, MAX_POS, HEAD_DIM), DTYPE)

    fwd = jax.jit(fused_llama_attention)
    out, new_past = fwd(hidden_states, attention_mask, position_ids,
                        past_key_value, params)
    out = jax.block_until_ready(out)
    new_past = jax.block_until_ready(new_past)

    ref_out, ref_past = reference_forward(hidden_states, attention_mask,
                                          position_ids, past_key_value, params)
    assert out.shape == (BATCH, SEQ, HIDDEN)
    assert jnp.allclose(out, ref_out, atol=2e-4, rtol=2e-4), "output mismatch"
    assert jnp.allclose(new_past, ref_past, atol=2e-4, rtol=2e-4), "kv cache mismatch"

    print("KERNEL_OK")
</pallas_src>

<mosaic_0001>
module attributes {stable_mosaic.version = 11 : i64} {
  func.func @_fused_attention_kernel(%arg0: i32, %arg1: memref<16x32xf32, #tpu.memory_space<vmem>>, %arg2: memref<32x96xf32, #tpu.memory_space<vmem>>, %arg3: memref<32x32xf32, #tpu.memory_space<vmem>>, %arg4: memref<16x8xf32, #tpu.memory_space<vmem>>, %arg5: memref<16x8xf32, #tpu.memory_space<vmem>>, %arg6: memref<2x8x8xf32, #tpu.memory_space<vmem>>, %arg7: memref<2x2x4x16x8xf32, #tpu.memory_space<any>>, %arg8: memref<16x32xf32, #tpu.memory_space<vmem>>, %arg9: memref<2x2x4x8x8xf32, #tpu.memory_space<vmem>>) attributes {dimension_semantics = [#tpu.dimension_semantics<arbitrary>], iteration_bounds = array<i64: 1>, scalar_prefetch = 0 : i64, scratch_operands = 0 : i64, tpu.core_type = #tpu.core_type<tc>, window_params = [{pipeline_mode = #tpu.pipeline_mode<synchronous>, transform_indices = @transform_0, window_bounds = array<i64: 16, 32>}, {pipeline_mode = #tpu.pipeline_mode<synchronous>, transform_indices = @transform_1, window_bounds = array<i64: 32, 96>}, {pipeline_mode = #tpu.pipeline_mode<synchronous>, transform_indices = @transform_2, window_bounds = array<i64: 32, 32>}, {pipeline_mode = #tpu.pipeline_mode<synchronous>, transform_indices = @transform_3, window_bounds = array<i64: 16, 8>}, {pipeline_mode = #tpu.pipeline_mode<synchronous>, transform_indices = @transform_4, window_bounds = array<i64: 16, 8>}, {pipeline_mode = #tpu.pipeline_mode<synchronous>, transform_indices = @transform_5, window_bounds = array<i64: 2, 8, 8>}, {}, {pipeline_mode = #tpu.pipeline_mode<synchronous>, transform_indices = @transform_7, window_bounds = array<i64: 16, 32>}, {transform_indices = @transform_8, window_bounds = array<i64: 2, 2, 4, 8, 8>}]} {
    %c0 = arith.constant 0 : index
    %c0_0 = arith.constant 0 : index
    %0 = vector.load %arg1[%c0, %c0_0] : memref<16x32xf32, #tpu.memory_space<vmem>>, vector<16x32xf32>
    %c0_1 = arith.constant 0 : index
    %c0_2 = arith.constant 0 : index
    %1 = vector.load %arg2[%c0_1, %c0_2] : memref<32x96xf32, #tpu.memory_space<vmem>>, vector<32x96xf32>
    %cst = arith.constant dense<0.000000e+00> : vector<16x96xf32>
    %2 = tpu.matmul %0, %1, %cst {dimension_numbers = #tpu.dot_dimension_numbers<[1], [0], [0], [1], [0, 0, 1, 1], [], []>} : vector<16x32xf32>, vector<32x96xf32>, vector<16x96xf32> -> vector<16x96xf32>
    %c0_3 = arith.constant 0 : index
    %c0_4 = arith.constant 0 : index
    %3 = vector.load %arg4[%c0_3, %c0_4] : memref<16x8xf32, #tpu.memory_space<vmem>>, vector<16x8xf32>
    %c0_5 = arith.constant 0 : index
    %c0_6 = arith.constant 0 : index
    %4 = vector.load %arg5[%c0_5, %c0_6] : memref<16x8xf32, #tpu.memory_space<vmem>>, vector<16x8xf32>
    %5 = vector.extract_strided_slice %3 {offsets = [0, 0], sizes = [8, 4], strides = [1, 1]} : vector<16x8xf32> to vector<8x4xf32>
    %6 = vector.extract_strided_slice %4 {offsets = [0, 0], sizes = [8, 4], strides = [1, 1]} : vector<16x8xf32> to vector<8x4xf32>
    %cst_7 = arith.constant 0.353553385 : f32
    %7 = vector.broadcast %cst_7 : f32 to vector<8x4xf32>
    %8 = arith.mulf %5, %7 : vector<8x4xf32>
    %cst_8 = arith.constant 0.353553385 : f32
    %9 = vector.broadcast %cst_8 : f32 to vector<8x4xf32>
    %10 = arith.mulf %6, %9 : vector<8x4xf32>
    %c0_9 = arith.constant 0 : index
    %c0_10 = arith.constant 0 : index
    %c0_11 = arith.constant 0 : index
    %11 = vector.load %arg6[%c0_9, %c0_10, %c0_11] : memref<2x8x8xf32, #tpu.memory_space<vmem>>, vector<1x8x8xf32>
    %12 = vector.shape_cast %11 : vector<1x8x8xf32> to vector<8x8xf32>
    %cst_12 = arith.constant -3.40282347E+38 : f32
    %13 = vector.broadcast %cst_12 : f32 to vector<8x8xf32>
    %14 = arith.maximumf %12, %13 : vector<8x8xf32>
    %15 = vector.extract_strided_slice %2 {offsets = [0, 0], sizes = [8, 8], strides = [1, 1]} : vector<16x96xf32> to vector<8x8xf32>
    %16 = vector.extract_strided_slice %2 {offsets = [0, 32], sizes = [8, 8], strides = [1, 1]} : vector<16x96xf32> to vector<8x8xf32>
    %17 = vector.extract_strided_slice %2 {offsets = [0, 64], sizes = [8, 8], strides = [1, 1]} : vector<16x96xf32> to vector<8x8xf32>
    %18 = vector.extract_strided_slice %15 {offsets = [0, 0], sizes = [8, 4], strides = [1, 1]} : vector<8x8xf32> to vector<8x4xf32>
    %19 = vector.extract_strided_slice %15 {offsets = [0, 4], sizes = [8, 4], strides = [1, 1]} : vector<8x8xf32> to vector<8x4xf32>
    %20 = arith.mulf %18, %8 : vector<8x4xf32>
    %21 = arith.mulf %19, %10 : vector<8x4xf32>
    %22 = arith.subf %20, %21 : vector<8x4xf32>
    %23 = arith.mulf %19, %8 : vector<8x4xf32>
    %24 = arith.mulf %18, %10 : vector<8x4xf32>
    %25 = arith.addf %23, %24 : vector<8x4xf32>
    %26 = tpu.concatenate %22, %25 in 1 : vector<8x4xf32>, vector<8x4xf32> -> vector<8x8xf32>
    %27 = vector.extract_strided_slice %16 {offsets = [0, 0], sizes = [8, 4], strides = [1, 1]} : vector<8x8xf32> to vector<8x4xf32>
    %28 = vector.extract_strided_slice %16 {offsets = [0, 4], sizes = [8, 4], strides = [1, 1]} : vector<8x8xf32> to vector<8x4xf32>
    %29 = arith.mulf %27, %5 : vector<8x4xf32>
    %30 = arith.mulf %28, %6 : vector<8x4xf32>
    %31 = arith.subf %29, %30 : vector<8x4xf32>
    %32 = arith.mulf %28, %5 : vector<8x4xf32>
    %33 = arith.mulf %27, %6 : vector<8x4xf32>
    %34 = arith.addf %32, %33 : vector<8x4xf32>
    %35 = tpu.concatenate %31, %34 in 1 : vector<8x4xf32>, vector<8x4xf32> -> vector<8x8xf32>
    %c0_13 = arith.constant 0 : index
    %c0_14 = arith.constant 0 : index
    %c0_15 = arith.constant 0 : index
    %c0_16 = arith.constant 0 : index
    %c0_17 = arith.constant 0 : index
    %36 = vector.load %arg9[%c0_13, %c0_14, %c0_15, %c0_16, %c0_17] : memref<2x2x4x8x8xf32, #tpu.memory_space<vmem>>, vector<1x1x1x8x8xf32>
    %37 = vector.shape_cast %36 : vector<1x1x1x8x8xf32> to vector<8x8xf32>
    %38 = vector.shape_cast %35 : vector<8x8xf32> to vector<1x1x1x8x8xf32>
    tpu.vector_store %arg9[%c0_13, %c0_14, %c0_15, %c0_16, %c0_17], %38 {strides = array<i32>} : memref<2x2x4x8x8xf32, #tpu.memory_space<vmem>>, vector<1x1x1x8x8xf32>,
    %c1 = arith.constant 1 : index
    %c0_18 = arith.constant 0 : index
    %c0_19 = arith.constant 0 : index
    %c0_20 = arith.constant 0 : index
    %c0_21 = arith.constant 0 : index
    %39 = vector.load %arg9[%c1, %c0_18, %c0_19, %c0_20, %c0_21] : memref<2x2x4x8x8xf32, #tpu.memory_space<vmem>>, vector<1x1x1x8x8xf32>
    %40 = vector.shape_cast %39 : vector<1x1x1x8x8xf32> to vector<8x8xf32>
    %41 = vector.shape_cast %17 : vector<8x8xf32> to vector<1x1x1x8x8xf32>
    tpu.vector_store %arg9[%c1, %c0_18, %c0_19, %c0_20, %c0_21], %41 {strides = array<i32>} : memref<2x2x4x8x8xf32, #tpu.memory_space<vmem>>, vector<1x1x1x8x8xf32>,
    %cst_22 = arith.constant dense<0.000000e+00> : vector<8x8xf32>
    %42 = tpu.matmul %26, %35, %cst_22 {dimension_numbers = #tpu.dot_dimension_numbers<[1], [1], [0], [0], [0, 0, 1, 0], [], []>} : vector<8x8xf32>, vector<8x8xf32>, vector<8x8xf32> -> vector<8x8xf32>
    %43 = arith.addf %42, %14 : vector<8x8xf32>
    %cst_23 = arith.constant dense<0xFF800000> : vector<8xf32>
    %44 = vector.multi_reduction <maximumf>, %43, %cst_23 [1] : vector<8x8xf32> to vector<8xf32>
    %45 = vector.shape_cast %44 : vector<8xf32> to vector<8x1xf32>
    %46 = vector.broadcast %45 : vector<8x1xf32> to vector<8x8xf32>
    %47 = arith.subf %43, %46 : vector<8x8xf32>
    %48 = math.exp %47 : vector<8x8xf32>
    %cst_24 = arith.constant dense<0.000000e+00> : vector<8xf32>
    %49 = vector.multi_reduction <add>, %48, %cst_24 [1] : vector<8x8xf32> to vector<8xf32>
    %50 = vector.shape_cast %49 : vector<8xf32> to vector<8x1xf32>
    %cst_25 = arith.constant dense<0.000000e+00> : vector<8x8xf32>
    %51 = tpu.matmul %48, %17, %cst_25 {dimension_numbers = #tpu.dot_dimension_numbers<[1], [0], [0], [1], [0, 0, 1, 1], [], []>} : vector<8x8xf32>, vector<8x8xf32>, vector<8x8xf32> -> vector<8x8xf32>
    %52 = tpu.reciprocal %50 {approx = true} : vector<8x1xf32> -> vector<8x1xf32>
    %53 = vector.broadcast %52 : vector<8x1xf32> to vector<8x8xf32>
    %54 = arith.mulf %51, %53 : vector<8x8xf32>
    %55 = vector.extract_strided_slice %2 {offsets = [0, 8], sizes = [8, 8], strides = [1, 1]} : vector<16x96xf32> to vector<8x8xf32>
    %56 = vector.extract_strided_slice %2 {offsets = [0, 40], sizes = [8, 8], strides = [1, 1]} : vector<16x96xf32> to vector<8x8xf32>
    %57 = vector.extract_strided_slice %2 {offsets = [0, 72], sizes = [8, 8], strides = [1, 1]} : vector<16x96xf32> to vector<8x8xf32>
    %58 = vector.extract_strided_slice %55 {offsets = [0, 0], sizes = [8, 4], strides = [1, 1]} : vector<8x8xf32> to vector<8x4xf32>
    %59 = vector.extract_strided_slice %55 {offsets = [0, 4], sizes = [8, 4], strides = [1, 1]} : vector<8x8xf32> to vector<8x4xf32>
    %60 = arith.mulf %58, %8 : vector<8x4xf32>
    %61 = arith.mulf %59, %10 : vector<8x4xf32>
    %62 = arith.subf %60, %61 : vector<8x4xf32>
    %63 = arith.mulf %59, %8 : vector<8x4xf32>
    %64 = arith.mulf %58, %10 : vector<8x4xf32>
    %65 = arith.addf %63, %64 : vector<8x4xf32>
    %66 = tpu.concatenate %62, %65 in 1 : vector<8x4xf32>, vector<8x4xf32> -> vector<8x8xf32>
    %67 = vector.extract_strided_slice %56 {offsets = [0, 0], sizes = [8, 4], strides = [1, 1]} : vector<8x8xf32> to vector<8x4xf32>
    %68 = vector.extract_strided_slice %56 {offsets = [0, 4], sizes = [8, 4], strides = [1, 1]} : vector<8x8xf32> to vector<8x4xf32>
    %69 = arith.mulf %67, %5 : vector<8x4xf32>
    %70 = arith.mulf %68, %6 : vector<8x4xf32>
    %71 = arith.subf %69, %70 : vector<8x4xf32>
    %72 = arith.mulf %68, %5 : vector<8x4xf32>
    %73 = arith.mulf %67, %6 : vector<8x4xf32>
    %74 = arith.addf %72, %73 : vector<8x4xf32>
    %75 = tpu.concatenate %71, %74 in 1 : vector<8x4xf32>, vector<8x4xf32> -> vector<8x8xf32>
    %c0_26 = arith.constant 0 : index
    %c0_27 = arith.constant 0 : index
    %c1_28 = arith.constant 1 : index
    %c0_29 = arith.constant 0 : index
    %c0_30 = arith.constant 0 : index
    %76 = vector.load %arg9[%c0_26, %c0_27, %c1_28, %c0_29, %c0_30] : memref<2x2x4x8x8xf32, #tpu.memory_space<vmem>>, vector<1x1x1x8x8xf32>
    %77 = vector.shape_cast %76 : vector<1x1x1x8x8xf32> to vector<8x8xf32>
    %78 = vector.shape_cast %75 : vector<8x8xf32> to vector<1x1x1x8x8xf32>
    tpu.vector_store %arg9[%c0_26, %c0_27, %c1_28, %c0_29, %c0_30], %78 {strides = array<i32>} : memref<2x2x4x8x8xf32, #tpu.memory_space<vmem>>, vector<1x1x1x8x8xf32>,
    %c1_31 = arith.constant 1 : index
    %c0_32 = arith.constant 0 : index
    %c1_33 = arith.constant 1 : index
    %c0_34 = arith.constant 0 : index
    %c0_35 = arith.constant 0 : index
    %79 = vector.load %arg9[%c1_31, %c0_32, %c1_33, %c0_34, %c0_35] : memref<2x2x4x8x8xf32, #tpu.memory_space<vmem>>, vector<1x1x1x8x8xf32>
    %80 = vector.shape_cast %79 : vector<1x1x1x8x8xf32> to vector<8x8xf32>
    %81 = vector.shape_cast %57 : vector<8x8xf32> to vector<1x1x1x8x8xf32>
    tpu.vector_store %arg9[%c1_31, %c0_32, %c1_33, %c0_34, %c0_35], %81 {strides = array<i32>} : memref<2x2x4x8x8xf32, #tpu.memory_space<vmem>>, vector<1x1x1x8x8xf32>,
    %cst_36 = arith.constant dense<0.000000e+00> : vector<8x8xf32>
    %82 = tpu.matmul %66, %75, %cst_36 {dimension_numbers = #tpu.dot_dimension_numbers<[1], [1], [0], [0], [0, 0, 1, 0], [], []>} : vector<8x8xf32>, vector<8x8xf32>, vector<8x8xf32> -> vector<8x8xf32>
    %83 = arith.addf %82, %14 : vector<8x8xf32>
    %cst_37 = arith.constant dense<0xFF800000> : vector<8xf32>
    %84 = vector.multi_reduction <maximumf>, %83, %cst_37 [1] : vector<8x8xf32> to vector<8xf32>
    %85 = vector.shape_cast %84 : vector<8xf32> to vector<8x1xf32>
    %86 = vector.broadcast %85 : vector<8x1xf32> to vector<8x8xf32>
    %87 = arith.subf %83, %86 : vector<8x8xf32>
    %88 = math.exp %87 : vector<8x8xf32>
    %cst_38 = arith.constant dense<0.000000e+00> : vector<8xf32>
    %89 = vector.multi_reduction <add>, %88, %cst_38 [1] : vector<8x8xf32> to vector<8xf32>
    %90 = vector.shape_cast %89 : vector<8xf32> to vector<8x1xf32>
    %cst_39 = arith.constant dense<0.000000e+00> : vector<8x8xf32>
    %91 = tpu.matmul %88, %57, %cst_39 {dimension_numbers = #tpu.dot_dimension_numbers<[1], [0], [0], [1], [0, 0, 1, 1], [], []>} : vector<8x8xf32>, vector<8x8xf32>, vector<8x8xf32> -> vector<8x8xf32>
    %92 = tpu.reciprocal %90 {approx = true} : vector<8x1xf32> -> vector<8x1xf32>
    %93 = vector.broadcast %92 : vector<8x1xf32> to vector<8x8xf32>
    %94 = arith.mulf %91, %93 : vector<8x8xf32>
    %95 = vector.extract_strided_slice %2 {offsets = [0, 16], sizes = [8, 8], strides = [1, 1]} : vector<16x96xf32> to vector<8x8xf32>
    %96 = vector.extract_strided_slice %2 {offsets = [0, 48], sizes = [8, 8], strides = [1, 1]} : vector<16x96xf32> to vector<8x8xf32>
    %97 = vector.extract_strided_slice %2 {offsets = [0, 80], sizes = [8, 8], strides = [1, 1]} : vector<16x96xf32> to vector<8x8xf32>
    %98 = vector.extract_strided_slice %95 {offsets = [0, 0], sizes = [8, 4], strides = [1, 1]} : vector<8x8xf32> to vector<8x4xf32>
    %99 = vector.extract_strided_slice %95 {offsets = [0, 4], sizes = [8, 4], strides = [1, 1]} : vector<8x8xf32> to vector<8x4xf32>
    %100 = arith.mulf %98, %8 : vector<8x4xf32>
    %101 = arith.mulf %99, %10 : vector<8x4xf32>
    %102 = arith.subf %100, %101 : vector<8x4xf32>
    %103 = arith.mulf %99, %8 : vector<8x4xf32>
    %104 = arith.mulf %98, %10 : vector<8x4xf32>
    %105 = arith.addf %103, %104 : vector<8x4xf32>
    %106 = tpu.concatenate %102, %105 in 1 : vector<8x4xf32>, vector<8x4xf32> -> vector<8x8xf32>
    %107 = vector.extract_strided_slice %96 {offsets = [0, 0], sizes = [8, 4], strides = [1, 1]} : vector<8x8xf32> to vector<8x4xf32>
    %108 = vector.extract_strided_slice %96 {offsets = [0, 4], sizes = [8, 4], strides = [1, 1]} : vector<8x8xf32> to vector<8x4xf32>
    %109 = arith.mulf %107, %5 : vector<8x4xf32>
    %110 = arith.mulf %108, %6 : vector<8x4xf32>
    %111 = arith.subf %109, %110 : vector<8x4xf32>
    %112 = arith.mulf %108, %5 : vector<8x4xf32>
    %113 = arith.mulf %107, %6 : vector<8x4xf32>
    %114 = arith.addf %112, %113 : vector<8x4xf32>
    %115 = tpu.concatenate %111, %114 in 1 : vector<8x4xf32>, vector<8x4xf32> -> vector<8x8xf32>
    %c0_40 = arith.constant 0 : index
    %c0_41 = arith.constant 0 : index
    %c2 = arith.constant 2 : index
    %c0_42 = arith.constant 0 : index
    %c0_43 = arith.constant 0 : index
    %116 = vector.load %arg9[%c0_40, %c0_41, %c2, %c0_42, %c0_43] : memref<2x2x4x8x8xf32, #tpu.memory_space<vmem>>, vector<1x1x1x8x8xf32>
    %117 = vector.shape_cast %116 : vector<1x1x1x8x8xf32> to vector<8x8xf32>
    %118 = vector.shape_cast %115 : vector<8x8xf32> to vector<1x1x1x8x8xf32>
    tpu.vector_store %arg9[%c0_40, %c0_41, %c2, %c0_42, %c0_43], %118 {strides = array<i32>} : memref<2x2x4x8x8xf32, #tpu.memory_space<vmem>>, vector<1x1x1x8x8xf32>,
    %c1_44 = arith.constant 1 : index
    %c0_45 = arith.constant 0 : index
    %c2_46 = arith.constant 2 : index
    %c0_47 = arith.constant 0 : index
    %c0_48 = arith.constant 0 : index
    %119 = vector.load %arg9[%c1_44, %c0_45, %c2_46, %c0_47, %c0_48] : memref<2x2x4x8x8xf32, #tpu.memory_space<vmem>>, vector<1x1x1x8x8xf32>
    %120 = vector.shape_cast %119 : vector<1x1x1x8x8xf32> to vector<8x8xf32>
    %121 = vector.shape_cast %97 : vector<8x8xf32> to vector<1x1x1x8x8xf32>
    tpu.vector_store %arg9[%c1_44, %c0_45, %c2_46, %c0_47, %c0_48], %121 {strides = array<i32>} : memref<2x2x4x8x8xf32, #tpu.memory_space<vmem>>, vector<1x1x1x8x8xf32>,
    %cst_49 = arith.constant dense<0.000000e+00> : vector<8x8xf32>
    %122 = tpu.matmul %106, %115, %cst_49 {dimension_numbers = #tpu.dot_dimension_numbers<[1], [1], [0], [0], [0, 0, 1, 0], [], []>} : vector<8x8xf32>, vector<8x8xf32>, vector<8x8xf32> -> vector<8x8xf32>
    %123 = arith.addf %122, %14 : vector<8x8xf32>
    %cst_50 = arith.constant dense<0xFF800000> : vector<8xf32>
    %124 = vector.multi_reduction <maximumf>, %123, %cst_50 [1] : vector<8x8xf32> to vector<8xf32>
    %125 = vector.shape_cast %124 : vector<8xf32> to vector<8x1xf32>
    %126 = vector.broadcast %125 : vector<8x1xf32> to vector<8x8xf32>
    %127 = arith.subf %123, %126 : vector<8x8xf32>
    %128 = math.exp %127 : vector<8x8xf32>
    %cst_51 = arith.constant dense<0.000000e+00> : vector<8xf32>
    %129 = vector.multi_reduction <add>, %128, %cst_51 [1] : vector<8x8xf32> to vector<8xf32>
    %130 = vector.shape_cast %129 : vector<8xf32> to vector<8x1xf32>
    %cst_52 = arith.constant dense<0.000000e+00> : vector<8x8xf32>
    %131 = tpu.matmul %128, %97, %cst_52 {dimension_numbers = #tpu.dot_dimension_numbers<[1], [0], [0], [1], [0, 0, 1, 1], [], []>} : vector<8x8xf32>, vector<8x8xf32>, vector<8x8xf32> -> vector<8x8xf32>
    %132 = tpu.reciprocal %130 {approx = true} : vector<8x1xf32> -> vector<8x1xf32>
    %133 = vector.broadcast %132 : vector<8x1xf32> to vector<8x8xf32>
    %134 = arith.mulf %131, %133 : vector<8x8xf32>
    %135 = vector.extract_strided_slice %2 {offsets = [0, 24], sizes = [8, 8], strides = [1, 1]} : vector<16x96xf32> to vector<8x8xf32>
    %136 = vector.extract_strided_slice %2 {offsets = [0, 56], sizes = [8, 8], strides = [1, 1]} : vector<16x96xf32> to vector<8x8xf32>
    %137 = vector.extract_strided_slice %2 {offsets = [0, 88], sizes = [8, 8], strides = [1, 1]} : vector<16x96xf32> to vector<8x8xf32>
    %138 = vector.extract_strided_slice %135 {offsets = [0, 0], sizes = [8, 4], strides = [1, 1]} : vector<8x8xf32> to vector<8x4xf32>
    %139 = vector.extract_strided_slice %135 {offsets = [0, 4], sizes = [8, 4], strides = [1, 1]} : vector<8x8xf32> to vector<8x4xf32>
    %140 = arith.mulf %138, %8 : vector<8x4xf32>
    %141 = arith.mulf %139, %10 : vector<8x4xf32>
    %142 = arith.subf %140, %141 : vector<8x4xf32>
    %143 = arith.mulf %139, %8 : vector<8x4xf32>
    %144 = arith.mulf %138, %10 : vector<8x4xf32>
    %145 = arith.addf %143, %144 : vector<8x4xf32>
    %146 = tpu.concatenate %142, %145 in 1 : vector<8x4xf32>, vector<8x4xf32> -> vector<8x8xf32>
    %147 = vector.extract_strided_slice %136 {offsets = [0, 0], sizes = [8, 4], strides = [1, 1]} : vector<8x8xf32> to vector<8x4xf32>
    %148 = vector.extract_strided_slice %136 {offsets = [0, 4], sizes = [8, 4], strides = [1, 1]} : vector<8x8xf32> to vector<8x4xf32>
    %149 = arith.mulf %147, %5 : vector<8x4xf32>
    %150 = arith.mulf %148, %6 : vector<8x4xf32>
    %151 = arith.subf %149, %150 : vector<8x4xf32>
    %152 = arith.mulf %148, %5 : vector<8x4xf32>
    %153 = arith.mulf %147, %6 : vector<8x4xf32>
    %154 = arith.addf %152, %153 : vector<8x4xf32>
    %155 = tpu.concatenate %151, %154 in 1 : vector<8x4xf32>, vector<8x4xf32> -> vector<8x8xf32>
    %c0_53 = arith.constant 0 : index
    %c0_54 = arith.constant 0 : index
    %c3 = arith.constant 3 : index
    %c0_55 = arith.constant 0 : index
    %c0_56 = arith.constant 0 : index
    %156 = vector.load %arg9[%c0_53, %c0_54, %c3, %c0_55, %c0_56] : memref<2x2x4x8x8xf32, #tpu.memory_space<vmem>>, vector<1x1x1x8x8xf32>
    %157 = vector.shape_cast %156 : vector<1x1x1x8x8xf32> to vector<8x8xf32>
    %158 = vector.shape_cast %155 : vector<8x8xf32> to vector<1x1x1x8x8xf32>
    tpu.vector_store %arg9[%c0_53, %c0_54, %c3, %c0_55, %c0_56], %158 {strides = array<i32>} : memref<2x2x4x8x8xf32, #tpu.memory_space<vmem>>, vector<1x1x1x8x8xf32>,
    %c1_57 = arith.constant 1 : index
    %c0_58 = arith.constant 0 : index
    %c3_59 = arith.constant 3 : index
    %c0_60 = arith.constant 0 : index
    %c0_61 = arith.constant 0 : index
    %159 = vector.load %arg9[%c1_57, %c0_58, %c3_59, %c0_60, %c0_61] : memref<2x2x4x8x8xf32, #tpu.memory_space<vmem>>, vector<1x1x1x8x8xf32>
    %160 = vector.shape_cast %159 : vector<1x1x1x8x8xf32> to vector<8x8xf32>
    %161 = vector.shape_cast %137 : vector<8x8xf32> to vector<1x1x1x8x8xf32>
    tpu.vector_store %arg9[%c1_57, %c0_58, %c3_59, %c0_60, %c0_61], %161 {strides = array<i32>} : memref<2x2x4x8x8xf32, #tpu.memory_space<vmem>>, vector<1x1x1x8x8xf32>,
    %cst_62 = arith.constant dense<0.000000e+00> : vector<8x8xf32>
    %162 = tpu.matmul %146, %155, %cst_62 {dimension_numbers = #tpu.dot_dimension_numbers<[1], [1], [0], [0], [0, 0, 1, 0], [], []>} : vector<8x8xf32>, vector<8x8xf32>, vector<8x8xf32> -> vector<8x8xf32>
    %163 = arith.addf %162, %14 : vector<8x8xf32>
    %cst_63 = arith.constant dense<0xFF800000> : vector<8xf32>
    %164 = vector.multi_reduction <maximumf>, %163, %cst_63 [1] : vector<8x8xf32> to vector<8xf32>
    %165 = vector.shape_cast %164 : vector<8xf32> to vector<8x1xf32>
    %166 = vector.broadcast %165 : vector<8x1xf32> to vector<8x8xf32>
    %167 = arith.subf %163, %166 : vector<8x8xf32>
    %168 = math.exp %167 : vector<8x8xf32>
    %cst_64 = arith.constant dense<0.000000e+00> : vector<8xf32>
    %169 = vector.multi_reduction <add>, %168, %cst_64 [1] : vector<8x8xf32> to vector<8xf32>
    %170 = vector.shape_cast %169 : vector<8xf32> to vector<8x1xf32>
    %cst_65 = arith.constant dense<0.000000e+00> : vector<8x8xf32>
    %171 = tpu.matmul %168, %137, %cst_65 {dimension_numbers = #tpu.dot_dimension_numbers<[1], [0], [0], [1], [0, 0, 1, 1], [], []>} : vector<8x8xf32>, vector<8x8xf32>, vector<8x8xf32> -> vector<8x8xf32>
    %172 = tpu.reciprocal %170 {approx = true} : vector<8x1xf32> -> vector<8x1xf32>
    %173 = vector.broadcast %172 : vector<8x1xf32> to vector<8x8xf32>
    %174 = arith.mulf %171, %173 : vector<8x8xf32>
    %175 = tpu.concatenate %54, %94, %134, %174 in 1 : vector<8x8xf32>, vector<8x8xf32>, vector<8x8xf32>, vector<8x8xf32> -> vector<8x32xf32>
    %176 = vector.extract_strided_slice %3 {offsets = [8, 0], sizes = [8, 4], strides = [1, 1]} : vector<16x8xf32> to vector<8x4xf32>
    %177 = vector.extract_strided_slice %4 {offsets = [8, 0], sizes = [8, 4], strides = [1, 1]} : vector<16x8xf32> to vector<8x4xf32>
    %cst_66 = arith.constant 0.353553385 : f32
    %178 = vector.broadcast %cst_66 : f32 to vector<8x4xf32>
    %179 = arith.mulf %176, %178 : vector<8x4xf32>
    %cst_67 = arith.constant 0.353553385 : f32
    %180 = vector.broadcast %cst_67 : f32 to vector<8x4xf32>
    %181 = arith.mulf %177, %180 : vector<8x4xf32>
    %c1_68 = arith.constant 1 : index
    %c0_69 = arith.constant 0 : index
    %c0_70 = arith.constant 0 : index
    %182 = vector.load %arg6[%c1_68, %c0_69, %c0_70] : memref<2x8x8xf32, #tpu.memory_space<vmem>>, vector<1x8x8xf32>
    %183 = vector.shape_cast %182 : vector<1x8x8xf32> to vector<8x8xf32>
    %cst_71 = arith.constant -3.40282347E+38 : f32
    %184 = vector.broadcast %cst_71 : f32 to vector<8x8xf32>
    %185 = arith.maximumf %183, %184 : vector<8x8xf32>
    %186 = vector.extract_strided_slice %2 {offsets = [8, 0], sizes = [8, 8], strides = [1, 1]} : vector<16x96xf32> to vector<8x8xf32>
    %187 = vector.extract_strided_slice %2 {offsets = [8, 32], sizes = [8, 8], strides = [1, 1]} : vector<16x96xf32> to vector<8x8xf32>
    %188 = vector.extract_strided_slice %2 {offsets = [8, 64], sizes = [8, 8], strides = [1, 1]} : vector<16x96xf32> to vector<8x8xf32>
    %189 = vector.extract_strided_slice %186 {offsets = [0, 0], sizes = [8, 4], strides = [1, 1]} : vector<8x8xf32> to vector<8x4xf32>
    %190 = vector.extract_strided_slice %186 {offsets = [0, 4], sizes = [8, 4], strides = [1, 1]} : vector<8x8xf32> to vector<8x4xf32>
    %191 = arith.mulf %189, %179 : vector<8x4xf32>
    %192 = arith.mulf %190, %181 : vector<8x4xf32>
    %193 = arith.subf %191, %192 : vector<8x4xf32>
    %194 = arith.mulf %190, %179 : vector<8x4xf32>
    %195 = arith.mulf %189, %181 : vector<8x4xf32>
    %196 = arith.addf %194, %195 : vector<8x4xf32>
    %197 = tpu.concatenate %193, %196 in 1 : vector<8x4xf32>, vector<8x4xf32> -> vector<8x8xf32>
    %198 = vector.extract_strided_slice %187 {offsets = [0, 0], sizes = [8, 4], strides = [1, 1]} : vector<8x8xf32> to vector<8x4xf32>
    %199 = vector.extract_strided_slice %187 {offsets = [0, 4], sizes = [8, 4], strides = [1, 1]} : vector<8x8xf32> to vector<8x4xf32>
    %200 = arith.mulf %198, %176 : vector<8x4xf32>
    %201 = arith.mulf %199, %177 : vector<8x4xf32>
    %202 = arith.subf %200, %201 : vector<8x4xf32>
    %203 = arith.mulf %199, %176 : vector<8x4xf32>
    %204 = arith.mulf %198, %177 : vector<8x4xf32>
    %205 = arith.addf %203, %204 : vector<8x4xf32>
    %206 = tpu.concatenate %202, %205 in 1 : vector<8x4xf32>, vector<8x4xf32> -> vector<8x8xf32>
    %c0_72 = arith.constant 0 : index
    %c1_73 = arith.constant 1 : index
    %c0_74 = arith.constant 0 : index
    %c0_75 = arith.constant 0 : index
    %c0_76 = arith.constant 0 : index
    %207 = vector.load %arg9[%c0_72, %c1_73, %c0_74, %c0_75, %c0_76] : memref<2x2x4x8x8xf32, #tpu.memory_space<vmem>>, vector<1x1x1x8x8xf32>
    %208 = vector.shape_cast %207 : vector<1x1x1x8x8xf32> to vector<8x8xf32>
    %209 = vector.shape_cast %206 : vector<8x8xf32> to vector<1x1x1x8x8xf32>
    tpu.vector_store %arg9[%c0_72, %c1_73, %c0_74, %c0_75, %c0_76], %209 {strides = array<i32>} : memref<2x2x4x8x8xf32, #tpu.memory_space<vmem>>, vector<1x1x1x8x8xf32>,
    %c1_77 = arith.constant 1 : index
    %c1_78 = arith.constant 1 : index
    %c0_79 = arith.constant 0 : index
    %c0_80 = arith.constant 0 : index
    %c0_81 = arith.constant 0 : index
    %210 = vector.load %arg9[%c1_77, %c1_78, %c0_79, %c0_80, %c0_81] : memref<2x2x4x8x8xf32, #tpu.memory_space<vmem>>, vector<1x1x1x8x8xf32>
    %211 = vector.shape_cast %210 : vector<1x1x1x8x8xf32> to vector<8x8xf32>
    %212 = vector.shape_cast %188 : vector<8x8xf32> to vector<1x1x1x8x8xf32>
    tpu.vector_store %arg9[%c1_77, %c1_78, %c0_79, %c0_80, %c0_81], %212 {strides = array<i32>} : memref<2x2x4x8x8xf32, #tpu.memory_space<vmem>>, vector<1x1x1x8x8xf32>,
    %cst_82 = arith.constant dense<0.000000e+00> : vector<8x8xf32>
    %213 = tpu.matmul %197, %206, %cst_82 {dimension_numbers = #tpu.dot_dimension_numbers<[1], [1], [0], [0], [0, 0, 1, 0], [], []>} : vector<8x8xf32>, vector<8x8xf32>, vector<8x8xf32> -> vector<8x8xf32>
    %214 = arith.addf %213, %185 : vector<8x8xf32>
    %cst_83 = arith.constant dense<0xFF800000> : vector<8xf32>
    %215 = vector.multi_reduction <maximumf>, %214, %cst_83 [1] : vector<8x8xf32> to vector<8xf32>
    %216 = vector.shape_cast %215 : vector<8xf32> to vector<8x1xf32>
    %217 = vector.broadcast %216 : vector<8x1xf32> to vector<8x8xf32>
    %218 = arith.subf %214, %217 : vector<8x8xf32>
    %219 = math.exp %218 : vector<8x8xf32>
    %cst_84 = arith.constant dense<0.000000e+00> : vector<8xf32>
    %220 = vector.multi_reduction <add>, %219, %cst_84 [1] : vector<8x8xf32> to vector<8xf32>
    %221 = vector.shape_cast %220 : vector<8xf32> to vector<8x1xf32>
    %cst_85 = arith.constant dense<0.000000e+00> : vector<8x8xf32>
    %222 = tpu.matmul %219, %188, %cst_85 {dimension_numbers = #tpu.dot_dimension_numbers<[1], [0], [0], [1], [0, 0, 1, 1], [], []>} : vector<8x8xf32>, vector<8x8xf32>, vector<8x8xf32> -> vector<8x8xf32>
    %223 = tpu.reciprocal %221 {approx = true} : vector<8x1xf32> -> vector<8x1xf32>
    %224 = vector.broadcast %223 : vector<8x1xf32> to vector<8x8xf32>
    %225 = arith.mulf %222, %224 : vector<8x8xf32>
    %226 = vector.extract_strided_slice %2 {offsets = [8, 8], sizes = [8, 8], strides = [1, 1]} : vector<16x96xf32> to vector<8x8xf32>
    %227 = vector.extract_strided_slice %2 {offsets = [8, 40], sizes = [8, 8], strides = [1, 1]} : vector<16x96xf32> to vector<8x8xf32>
    %228 = vector.extract_strided_slice %2 {offsets = [8, 72], sizes = [8, 8], strides = [1, 1]} : vector<16x96xf32> to vector<8x8xf32>
    %229 = vector.extract_strided_slice %226 {offsets = [0, 0], sizes = [8, 4], strides = [1, 1]} : vector<8x8xf32> to vector<8x4xf32>
    %230 = vector.extract_strided_slice %226 {offsets = [0, 4], sizes = [8, 4], strides = [1, 1]} : vector<8x8xf32> to vector<8x4xf32>
    %231 = arith.mulf %229, %179 : vector<8x4xf32>
    %232 = arith.mulf %230, %181 : vector<8x4xf32>
    %233 = arith.subf %231, %232 : vector<8x4xf32>
    %234 = arith.mulf %230, %179 : vector<8x4xf32>
    %235 = arith.mulf %229, %181 : vector<8x4xf32>
    %236 = arith.addf %234, %235 : vector<8x4xf32>
    %237 = tpu.concatenate %233, %236 in 1 : vector<8x4xf32>, vector<8x4xf32> -> vector<8x8xf32>
    %238 = vector.extract_strided_slice %227 {offsets = [0, 0], sizes = [8, 4], strides = [1, 1]} : vector<8x8xf32> to vector<8x4xf32>
    %239 = vector.extract_strided_slice %227 {offsets = [0, 4], sizes = [8, 4], strides = [1, 1]} : vector<8x8xf32> to vector<8x4xf32>
    %240 = arith.mulf %238, %176 : vector<8x4xf32>
    %241 = arith.mulf %239, %177 : vector<8x4xf32>
    %242 = arith.subf %240, %241 : vector<8x4xf32>
    %243 = arith.mulf %239, %176 : vector<8x4xf32>
    %244 = arith.mulf %238, %177 : vector<8x4xf32>
    %245 = arith.addf %243, %244 : vector<8x4xf32>
    %246 = tpu.concatenate %242, %245 in 1 : vector<8x4xf32>, vector<8x4xf32> -> vector<8x8xf32>
    %c0_86 = arith.constant 0 : index
    %c1_87 = arith.constant 1 : index
    %c1_88 = arith.constant 1 : index
    %c0_89 = arith.constant 0 : index
    %c0_90 = arith.constant 0 : index
    %247 = vector.load %arg9[%c0_86, %c1_87, %c1_88, %c0_89, %c0_90] : memref<2x2x4x8x8xf32, #tpu.memory_space<vmem>>, vector<1x1x1x8x8xf32>
    %248 = vector.shape_cast %247 : vector<1x1x1x8x8xf32> to vector<8x8xf32>
    %249 = vector.shape_cast %246 : vector<8x8xf32> to vector<1x1x1x8x8xf32>
    tpu.vector_store %arg9[%c0_86, %c1_87, %c1_88, %c0_89, %c0_90], %249 {strides = array<i32>} : memref<2x2x4x8x8xf32, #tpu.memory_space<vmem>>, vector<1x1x1x8x8xf32>,
    %c1_91 = arith.constant 1 : index
    %c1_92 = arith.constant 1 : index
    %c1_93 = arith.constant 1 : index
    %c0_94 = arith.constant 0 : index
    %c0_95 = arith.constant 0 : index
    %250 = vector.load %arg9[%c1_91, %c1_92, %c1_93, %c0_94, %c0_95] : memref<2x2x4x8x8xf32, #tpu.memory_space<vmem>>, vector<1x1x1x8x8xf32>
    %251 = vector.shape_cast %250 : vector<1x1x1x8x8xf32> to vector<8x8xf32>
    %252 = vector.shape_cast %228 : vector<8x8xf32> to vector<1x1x1x8x8xf32>
    tpu.vector_store %arg9[%c1_91, %c1_92, %c1_93, %c0_94, %c0_95], %252 {strides = array<i32>} : memref<2x2x4x8x8xf32, #tpu.memory_space<vmem>>, vector<1x1x1x8x8xf32>,
    %cst_96 = arith.constant dense<0.000000e+00> : vector<8x8xf32>
    %253 = tpu.matmul %237, %246, %cst_96 {dimension_numbers = #tpu.dot_dimension_numbers<[1], [1], [0], [0], [0, 0, 1, 0], [], []>} : vector<8x8xf32>, vector<8x8xf32>, vector<8x8xf32> -> vector<8x8xf32>
    %254 = arith.addf %253, %185 : vector<8x8xf32>
    %cst_97 = arith.constant dense<0xFF800000> : vector<8xf32>
    %255 = vector.multi_reduction <maximumf>, %254, %cst_97 [1] : vector<8x8xf32> to vector<8xf32>
    %256 = vector.shape_cast %255 : vector<8xf32> to vector<8x1xf32>
    %257 = vector.broadcast %256 : vector<8x1xf32> to vector<8x8xf32>
    %258 = arith.subf %254, %257 : vector<8x8xf32>
    %259 = math.exp %258 : vector<8x8xf32>
    %cst_98 = arith.constant dense<0.000000e+00> : vector<8xf32>
    %260 = vector.multi_reduction <add>, %259, %cst_98 [1] : vector<8x8xf32> to vector<8xf32>
    %261 = vector.shape_cast %260 : vector<8xf32> to vector<8x1xf32>
    %cst_99 = arith.constant dense<0.000000e+00> : vector<8x8xf32>
    %262 = tpu.matmul %259, %228, %cst_99 {dimension_numbers = #tpu.dot_dimension_numbers<[1], [0], [0], [1], [0, 0, 1, 1], [], []>} : vector<8x8xf32>, vector<8x8xf32>, vector<8x8xf32> -> vector<8x8xf32>
    %263 = tpu.reciprocal %261 {approx = true} : vector<8x1xf32> -> vector<8x1xf32>
    %264 = vector.broadcast %263 : vector<8x1xf32> to vector<8x8xf32>
    %265 = arith.mulf %262, %264 : vector<8x8xf32>
    %266 = vector.extract_strided_slice %2 {offsets = [8, 16], sizes = [8, 8], strides = [1, 1]} : vector<16x96xf32> to vector<8x8xf32>
    %267 = vector.extract_strided_slice %2 {offsets = [8, 48], sizes = [8, 8], strides = [1, 1]} : vector<16x96xf32> to vector<8x8xf32>
    %268 = vector.extract_strided_slice %2 {offsets = [8, 80], sizes = [8, 8], strides = [1, 1]} : vector<16x96xf32> to vector<8x8xf32>
    %269 = vector.extract_strided_slice %266 {offsets = [0, 0], sizes = [8, 4], strides = [1, 1]} : vector<8x8xf32> to vector<8x4xf32>
    %270 = vector.extract_strided_slice %266 {offsets = [0, 4], sizes = [8, 4], strides = [1, 1]} : vector<8x8xf32> to vector<8x4xf32>
    %271 = arith.mulf %269, %179 : vector<8x4xf32>
    %272 = arith.mulf %270, %181 : vector<8x4xf32>
    %273 = arith.subf %271, %272 : vector<8x4xf32>
    %274 = arith.mulf %270, %179 : vector<8x4xf32>
    %275 = arith.mulf %269, %181 : vector<8x4xf32>
    %276 = arith.addf %274, %275 : vector<8x4xf32>
    %277 = tpu.concatenate %273, %276 in 1 : vector<8x4xf32>, vector<8x4xf32> -> vector<8x8xf32>
    %278 = vector.extract_strided_slice %267 {offsets = [0, 0], sizes = [8, 4], strides = [1, 1]} : vector<8x8xf32> to vector<8x4xf32>
    %279 = vector.extract_strided_slice %267 {offsets = [0, 4], sizes = [8, 4], strides = [1, 1]} : vector<8x8xf32> to vector<8x4xf32>
    %280 = arith.mulf %278, %176 : vector<8x4xf32>
    %281 = arith.mulf %279, %177 : vector<8x4xf32>
    %282 = arith.subf %280, %281 : vector<8x4xf32>
    %283 = arith.mulf %279, %176 : vector<8x4xf32>
    %284 = arith.mulf %278, %177 : vector<8x4xf32>
    %285 = arith.addf %283, %284 : vector<8x4xf32>
    %286 = tpu.concatenate %282, %285 in 1 : vector<8x4xf32>, vector<8x4xf32> -> vector<8x8xf32>
    %c0_100 = arith.constant 0 : index
    %c1_101 = arith.constant 1 : index
    %c2_102 = arith.constant 2 : index
    %c0_103 = arith.constant 0 : index
    %c0_104 = arith.constant 0 : index
    %287 = vector.load %arg9[%c0_100, %c1_101, %c2_102, %c0_103, %c0_104] : memref<2x2x4x8x8xf32, #tpu.memory_space<vmem>>, vector<1x1x1x8x8xf32>
    %288 = vector.shape_cast %287 : vector<1x1x1x8x8xf32> to vector<8x8xf32>
    %289 = vector.shape_cast %286 : vector<8x8xf32> to vector<1x1x1x8x8xf32>
    tpu.vector_store %arg9[%c0_100, %c1_101, %c2_102, %c0_103, %c0_104], %289 {strides = array<i32>} : memref<2x2x4x8x8xf32, #tpu.memory_space<vmem>>, vector<1x1x1x8x8xf32>,
    %c1_105 = arith.constant 1 : index
    %c1_106 = arith.constant 1 : index
    %c2_107 = arith.constant 2 : index
    %c0_108 = arith.constant 0 : index
    %c0_109 = arith.constant 0 : index
    %290 = vector.load %arg9[%c1_105, %c1_106, %c2_107, %c0_108, %c0_109] : memref<2x2x4x8x8xf32, #tpu.memory_space<vmem>>, vector<1x1x1x8x8xf32>
    %291 = vector.shape_cast %290 : vector<1x1x1x8x8xf32> to vector<8x8xf32>
    %292 = vector.shape_cast %268 : vector<8x8xf32> to vector<1x1x1x8x8xf32>
    tpu.vector_store %arg9[%c1_105, %c1_106, %c2_107, %c0_108, %c0_109], %292 {strides = array<i32>} : memref<2x2x4x8x8xf32, #tpu.memory_space<vmem>>, vector<1x1x1x8x8xf32>,
    %cst_110 = arith.constant dense<0.000000e+00> : vector<8x8xf32>
    %293 = tpu.matmul %277, %286, %cst_110 {dimension_numbers = #tpu.dot_dimension_numbers<[1], [1], [0], [0], [0, 0, 1, 0], [], []>} : vector<8x8xf32>, vector<8x8xf32>, vector<8x8xf32> -> vector<8x8xf32>
    %294 = arith.addf %293, %185 : vector<8x8xf32>
    %cst_111 = arith.constant dense<0xFF800000> : vector<8xf32>
    %295 = vector.multi_reduction <maximumf>, %294, %cst_111 [1] : vector<8x8xf32> to vector<8xf32>
    %296 = vector.shape_cast %295 : vector<8xf32> to vector<8x1xf32>
    %297 = vector.broadcast %296 : vector<8x1xf32> to vector<8x8xf32>
    %298 = arith.subf %294, %297 : vector<8x8xf32>
    %299 = math.exp %298 : vector<8x8xf32>
    %cst_112 = arith.constant dense<0.000000e+00> : vector<8xf32>
    %300 = vector.multi_reduction <add>, %299, %cst_112 [1] : vector<8x8xf32> to vector<8xf32>
    %301 = vector.shape_cast %300 : vector<8xf32> to vector<8x1xf32>
    %cst_113 = arith.constant dense<0.000000e+00> : vector<8x8xf32>
    %302 = tpu.matmul %299, %268, %cst_113 {dimension_numbers = #tpu.dot_dimension_numbers<[1], [0], [0], [1], [0, 0, 1, 1], [], []>} : vector<8x8xf32>, vector<8x8xf32>, vector<8x8xf32> -> vector<8x8xf32>
    %303 = tpu.reciprocal %301 {approx = true} : vector<8x1xf32> -> vector<8x1xf32>
    %304 = vector.broadcast %303 : vector<8x1xf32> to vector<8x8xf32>
    %305 = arith.mulf %302, %304 : vector<8x8xf32>
    %306 = vector.extract_strided_slice %2 {offsets = [8, 24], sizes = [8, 8], strides = [1, 1]} : vector<16x96xf32> to vector<8x8xf32>
    %307 = vector.extract_strided_slice %2 {offsets = [8, 56], sizes = [8, 8], strides = [1, 1]} : vector<16x96xf32> to vector<8x8xf32>
    %308 = vector.extract_strided_slice %2 {offsets = [8, 88], sizes = [8, 8], strides = [1, 1]} : vector<16x96xf32> to vector<8x8xf32>
    %309 = vector.extract_strided_slice %306 {offsets = [0, 0], sizes = [8, 4], strides = [1, 1]} : vector<8x8xf32> to vector<8x4xf32>
    %310 = vector.extract_strided_slice %306 {offsets = [0, 4], sizes = [8, 4], strides = [1, 1]} : vector<8x8xf32> to vector<8x4xf32>
    %311 = arith.mulf %309, %179 : vector<8x4xf32>
    %312 = arith.mulf %310, %181 : vector<8x4xf32>
    %313 = arith.subf %311, %312 : vector<8x4xf32>
    %314 = arith.mulf %310, %179 : vector<8x4xf32>
    %315 = arith.mulf %309, %181 : vector<8x4xf32>
    %316 = arith.addf %314, %315 : vector<8x4xf32>
    %317 = tpu.concatenate %313, %316 in 1 : vector<8x4xf32>, vector<8x4xf32> -> vector<8x8xf32>
    %318 = vector.extract_strided_slice %307 {offsets = [0, 0], sizes = [8, 4], strides = [1, 1]} : vector<8x8xf32> to vector<8x4xf32>
    %319 = vector.extract_strided_slice %307 {offsets = [0, 4], sizes = [8, 4], strides = [1, 1]} : vector<8x8xf32> to vector<8x4xf32>
    %320 = arith.mulf %318, %176 : vector<8x4xf32>
    %321 = arith.mulf %319, %177 : vector<8x4xf32>
    %322 = arith.subf %320, %321 : vector<8x4xf32>
    %323 = arith.mulf %319, %176 : vector<8x4xf32>
    %324 = arith.mulf %318, %177 : vector<8x4xf32>
    %325 = arith.addf %323, %324 : vector<8x4xf32>
    %326 = tpu.concatenate %322, %325 in 1 : vector<8x4xf32>, vector<8x4xf32> -> vector<8x8xf32>
    %c0_114 = arith.constant 0 : index
    %c1_115 = arith.constant 1 : index
    %c3_116 = arith.constant 3 : index
    %c0_117 = arith.constant 0 : index
    %c0_118 = arith.constant 0 : index
    %327 = vector.load %arg9[%c0_114, %c1_115, %c3_116, %c0_117, %c0_118] : memref<2x2x4x8x8xf32, #tpu.memory_space<vmem>>, vector<1x1x1x8x8xf32>
    %328 = vector.shape_cast %327 : vector<1x1x1x8x8xf32> to vector<8x8xf32>
    %329 = vector.shape_cast %326 : vector<8x8xf32> to vector<1x1x1x8x8xf32>
    tpu.vector_store %arg9[%c0_114, %c1_115, %c3_116, %c0_117, %c0_118], %329 {strides = array<i32>} : memref<2x2x4x8x8xf32, #tpu.memory_space<vmem>>, vector<1x1x1x8x8xf32>,
    %c1_119 = arith.constant 1 : index
    %c1_120 = arith.constant 1 : index
    %c3_121 = arith.constant 3 : index
    %c0_122 = arith.constant 0 : index
    %c0_123 = arith.constant 0 : index
    %330 = vector.load %arg9[%c1_119, %c1_120, %c3_121, %c0_122, %c0_123] : memref<2x2x4x8x8xf32, #tpu.memory_space<vmem>>, vector<1x1x1x8x8xf32>
    %331 = vector.shape_cast %330 : vector<1x1x1x8x8xf32> to vector<8x8xf32>
    %332 = vector.shape_cast %308 : vector<8x8xf32> to vector<1x1x1x8x8xf32>
    tpu.vector_store %arg9[%c1_119, %c1_120, %c3_121, %c0_122, %c0_123], %332 {strides = array<i32>} : memref<2x2x4x8x8xf32, #tpu.memory_space<vmem>>, vector<1x1x1x8x8xf32>,
    %cst_124 = arith.constant dense<0.000000e+00> : vector<8x8xf32>
    %333 = tpu.matmul %317, %326, %cst_124 {dimension_numbers = #tpu.dot_dimension_numbers<[1], [1], [0], [0], [0, 0, 1, 0], [], []>} : vector<8x8xf32>, vector<8x8xf32>, vector<8x8xf32> -> vector<8x8xf32>
    %334 = arith.addf %333, %185 : vector<8x8xf32>
    %cst_125 = arith.constant dense<0xFF800000> : vector<8xf32>
    %335 = vector.multi_reduction <maximumf>, %334, %cst_125 [1] : vector<8x8xf32> to vector<8xf32>
    %336 = vector.shape_cast %335 : vector<8xf32> to vector<8x1xf32>
    %337 = vector.broadcast %336 : vector<8x1xf32> to vector<8x8xf32>
    %338 = arith.subf %334, %337 : vector<8x8xf32>
    %339 = math.exp %338 : vector<8x8xf32>
    %cst_126 = arith.constant dense<0.000000e+00> : vector<8xf32>
    %340 = vector.multi_reduction <add>, %339, %cst_126 [1] : vector<8x8xf32> to vector<8xf32>
    %341 = vector.shape_cast %340 : vector<8xf32> to vector<8x1xf32>
    %cst_127 = arith.constant dense<0.000000e+00> : vector<8x8xf32>
    %342 = tpu.matmul %339, %308, %cst_127 {dimension_numbers = #tpu.dot_dimension_numbers<[1], [0], [0], [1], [0, 0, 1, 1], [], []>} : vector<8x8xf32>, vector<8x8xf32>, vector<8x8xf32> -> vector<8x8xf32>
    %343 = tpu.reciprocal %341 {approx = true} : vector<8x1xf32> -> vector<8x1xf32>
    %344 = vector.broadcast %343 : vector<8x1xf32> to vector<8x8xf32>
    %345 = arith.mulf %342, %344 : vector<8x8xf32>
    %346 = tpu.concatenate %225, %265, %305, %345 in 1 : vector<8x8xf32>, vector<8x8xf32>, vector<8x8xf32>, vector<8x8xf32> -> vector<8x32xf32>
    %347 = tpu.concatenate %175, %346 in 0 : vector<8x32xf32>, vector<8x32xf32> -> vector<16x32xf32>
    %c0_128 = arith.constant 0 : index
    %c0_129 = arith.constant 0 : index
    %348 = vector.load %arg3[%c0_128, %c0_129] : memref<32x32xf32, #tpu.memory_space<vmem>>, vector<32x32xf32>
    %cst_130 = arith.constant dense<0.000000e+00> : vector<16x32xf32>
    %349 = tpu.matmul %347, %348, %cst_130 {dimension_numbers = #tpu.dot_dimension_numbers<[1], [0], [0], [1], [0, 0, 1, 1], [], []>} : vector<16x32xf32>, vector<32x32xf32>, vector<16x32xf32> -> vector<16x32xf32>
    %c0_131 = arith.constant 0 : index
    %c0_132 = arith.constant 0 : index
    %350 = vector.load %arg8[%c0_131, %c0_132] : memref<16x32xf32, #tpu.memory_space<vmem>>, vector<16x32xf32>
    tpu.vector_store %arg8[%c0_131, %c0_132], %349 {strides = array<i32>} : memref<16x32xf32, #tpu.memory_space<vmem>>, vector<16x32xf32>,
    return
  }
  func.func @transform_0(%arg0: i32) -> (i32, i32) {
    %c0_i32 = arith.constant 0 : i32
    %c0_i32_0 = arith.constant 0 : i32
    %c0_i32_1 = arith.constant 0 : i32
    return %c0_i32, %c0_i32_0 : i32, i32
  }
  func.func @transform_1(%arg0: i32) -> (i32, i32) {
    %c0_i32 = arith.constant 0 : i32
    %c0_i32_0 = arith.constant 0 : i32
    %c0_i32_1 = arith.constant 0 : i32
    return %c0_i32, %c0_i32_0 : i32, i32
  }
  func.func @transform_2(%arg0: i32) -> (i32, i32) {
    %c0_i32 = arith.constant 0 : i32
    %c0_i32_0 = arith.constant 0 : i32
    %c0_i32_1 = arith.constant 0 : i32
    return %c0_i32, %c0_i32_0 : i32, i32
  }
  func.func @transform_3(%arg0: i32) -> (i32, i32) {
    %c0_i32 = arith.constant 0 : i32
    %c0_i32_0 = arith.constant 0 : i32
    %c0_i32_1 = arith.constant 0 : i32
    return %c0_i32, %c0_i32_0 : i32, i32
  }
  func.func @transform_4(%arg0: i32) -> (i32, i32) {
    %c0_i32 = arith.constant 0 : i32
    %c0_i32_0 = arith.constant 0 : i32
    %c0_i32_1 = arith.constant 0 : i32
    return %c0_i32, %c0_i32_0 : i32, i32
  }
  func.func @transform_5(%arg0: i32) -> (i32, i32, i32) {
    %c0_i32 = arith.constant 0 : i32
    %c0_i32_0 = arith.constant 0 : i32
    %c0_i32_1 = arith.constant 0 : i32
    %c0_i32_2 = arith.constant 0 : i32
    return %c0_i32, %c0_i32_0, %c0_i32_1 : i32, i32, i32
  }
  func.func @transform_7(%arg0: i32) -> (i32, i32) {
    %c0_i32 = arith.constant 0 : i32
    %c0_i32_0 = arith.constant 0 : i32
    %c0_i32_1 = arith.constant 0 : i32
    return %c0_i32, %c0_i32_0 : i32, i32
  }
  func.func @transform_8(%arg0: i32) -> (i32, i32, i32, i32, i32) {
    %c0_i32 = arith.constant 0 : i32
    %c0_i32_0 = arith.constant 0 : i32
    %c0_i32_1 = arith.constant 0 : i32
    %c0_i32_2 = arith.constant 0 : i32
    %c0_i32_3 = arith.constant 0 : i32
    %c0_i32_4 = arith.constant 0 : i32
    return %c0_i32, %c0_i32_0, %c0_i32_1, %c0_i32_2, %c0_i32_3 : i32, i32, i32, i32, i32
  }
}

</mosaic_0001>

<llo_original>
// kernel: fused_llama_attention.1
$region0: #{fused_llama_attention.1}
  #allocation0 [shape = 'u32[]', space=smem, size = 0x4, offset = 0x4, fixed_abs, tag = 'smem constant byte address 0x4 - core index']
  #allocation1 [shape = 'u32[72,128]{1,0:T(1,128)}', space=vmem, size = 0x9000, scoped, tag = 'internal scratch']
  %s0 = inlined_call_operand.vmem [shape: f32[16,32], index: 0, kind: input, shape index: {}]
  %s1 = inlined_call_operand.vmem [shape: f32[32,96], index: 1, kind: input, shape index: {}]
  %s2 = inlined_call_operand.vmem [shape: f32[32,32], index: 2, kind: input, shape index: {}]
  %s3 = inlined_call_operand.vmem [shape: f32[16,8], index: 3, kind: input, shape index: {}]
  %s4 = inlined_call_operand.vmem [shape: f32[16,8], index: 4, kind: input, shape index: {}]
  %s5 = inlined_call_operand.vmem [shape: f32[2,8,8], index: 5, kind: input, shape index: {}]
  %s6 = inlined_call_operand.vmem [shape: f32[2,2,4,16,8], index: 6, kind: input, shape index: {}, may-alias: {6,8}]
  %s7 = inlined_call_operand.hbm [shape: f32[16,32], index: 7, kind: output, shape index: {0}]
  %s8 = inlined_call_operand.vmem [shape: f32[2,2,4,16,8], index: 8, kind: output, shape index: {1}, may-alias: {6,8}]
  %9 = xla_tuple %s7, %s8
  %s10 = sld [smem:[#allocation0]]
  $region76: #{fused_llama_attention.1} parent=0
    _
  %s12 = ssub.s32 1, %s10
  %s13 = scalar_select 0, %s12, %s10
  $region1: #{fused_llama_attention.1} parent=0
    #allocation2 [shape = 'u8[8192]{0}', space=vmem, size = 0x2000, scoped, tag = 'output window, operand 0, single buffered']
    #allocation3 [shape = 's32[1]{0}', space=sflag, size = 0x4, scoped, tag = 'scoped memory for fused_llama_attention.1']
    #allocation4 [shape = 'u8[65536]{0}', space=vmem, size = 0x10000, scoped, tag = 'output window, operand 1, single buffered']
    %14 = vsyncpa [#allocation3], 0
    // Predicated region
    $region2: #{fused_llama_attention.1} parent=1 // pred_check
      _
    $region3: #{fused_llama_attention.1} parent=1 // pred_check_branch
      %16 = sbr.rel (0) target = $region5
    $region4: #{fused_llama_attention.1} parent=1 // pred_region
      _
    $region5: #{fused_llama_attention.1} parent=1 // pred_fallthru
      _
    // Predicated region
    $region6: #{fused_llama_attention.1} parent=1 // pred_check
      _
    $region7: #{fused_llama_attention.1} parent=1 // pred_check_branch
      %18 = sbr.rel (0) target = $region9
    $region8: #{fused_llama_attention.1} parent=1 // pred_region
      _
    $region9: #{fused_llama_attention.1} parent=1 // pred_fallthru
      _
    // Predicated region
    $region10: #{fused_llama_attention.1} parent=1 // pred_check
      _
    $region11: #{fused_llama_attention.1} parent=1 // pred_check_branch
      %20 = sbr.rel (0) target = $region13
    $region12: #{fused_llama_attention.1} parent=1 // pred_region
      _
    $region13: #{fused_llama_attention.1} parent=1 // pred_fallthru
      _
    // Predicated region
    $region14: #{fused_llama_attention.1} parent=1 // pred_check
      _
    $region15: #{fused_llama_attention.1} parent=1 // pred_check_branch
      %22 = sbr.rel (0) target = $region17
    $region16: #{fused_llama_attention.1} parent=1 // pred_region
      _
    $region17: #{fused_llama_attention.1} parent=1 // pred_fallthru
      _
    // Predicated region
    $region18: #{fused_llama_attention.1} parent=1 // pred_check
      _
    $region19: #{fused_llama_attention.1} parent=1 // pred_check_branch
      %24 = sbr.rel (0) target = $region21
    $region20: #{fused_llama_attention.1} parent=1 // pred_region
      _
    $region21: #{fused_llama_attention.1} parent=1 // pred_fallthru
      _
    // Predicated region
    $region22: #{fused_llama_attention.1} parent=1 // pred_check
      _
    $region23: #{fused_llama_attention.1} parent=1 // pred_check_branch
      %26 = sbr.rel (0) target = $region25
    $region24: #{fused_llama_attention.1} parent=1 // pred_region
      _
    $region25: #{fused_llama_attention.1} parent=1 // pred_fallthru
      _
    %v27 = vld [vmem:[%s0] sm:$0xff]
    %v28 = vld [vmem:[%s0 + $0x8] sm:$0xff]
    %v29 = vld [vmem:[%s1] sm:$0xff]
    %v30 = vld [vmem:[%s1 + $0x8] sm:$0xff]
    %v31 = vld [vmem:[%s1 + $0x10] sm:$0xff]
    %v32 = vld [vmem:[%s1 + $0x18] sm:$0xff]
    %vm33 = vcmask 261120
    %v35 = vsel %vm33, %v27, 0
    %v38 = vsel %vm33, %v28, 0
    %40 = vmatpush.msra.mxu0 0.0
    %41 = vmatpush.msra.mxu0 0.0
    %42 = vmatpush.msra.mxu0 0.0
    %43 = vmatpush.msra.mxu0 0.0
    %44 = vmatpush.msra.mxu0 0.0
    %45 = vmatpush.msra.mxu0 0.0
    %46 = vmatpush.msra.mxu0 0.0
    %47 = vmatpush.msra.mxu0 0.0
    %48 = vmatpush.msra.mxu0 0.0
    %49 = vmatpush.msra.mxu0 0.0
    %50 = vmatpush.msra.mxu0 0.0
    %51 = vmatpush.msra.mxu0 0.0
    %52 = vmatpush.msra.mxu0 %v32
    %53 = vmatpush.msra.mxu0 %v31
    %54 = vmatpush.msra.mxu0 %v30
    %55 = vmatpush.msra.mxu0 %v29
    %56 = vmatmul.f32.gmra.mxu0 %v35
    %v57 = vpop.f32.mrf.mxu0
    %v58 = vadd.f32 0.0, %v57
    %59 = vmatmul.f32.gmra.mxu0 %v38
    %v60 = vpop.f32.mrf.mxu0
    %v61 = vadd.f32 0.0, %v60
    %62 = vdwg.mxu0
    %v63 = vld [vmem:[%s3] sm:$0xff]
    %v64 = vld [vmem:[%s3 + $0x8] sm:$0xff]
    %v65 = vld [vmem:[%s4] sm:$0xff]
    %v66 = vld [vmem:[%s4 + $0x8] sm:$0xff]
    %v67 = vmul.f32 %v63, 0.35355338
    %v68 = vmul.f32 %v65, 0.35355338
    %v69 = vld [vmem:[%s5] sm:$0xff]
    %v70 = vmax.f32 %v69, -3.4028235e+38
    %v71 = vmul.f32 %v58, %v67
    %73 = vrot.lane.b32.xlu0 %v68, 4
    %v74 = vpop.permute.xlu0 %73
    %v76 = vmul.f32 %v58, %v74
    %78 = vrot.lane.b32.xlu0 %v76, 124
    %v79 = vpop.permute.xlu0 %78
    %v81 = vsub.f32 %v71, %v79
    %83 = vrot.lane.b32.xlu0 %v67, 4
    %v84 = vpop.permute.xlu0 %83
    %v86 = vmul.f32 %v58, %v84
    %v87 = vmul.f32 %v58, %v68
    %89 = vrot.lane.b32.xlu0 %v87, 4
    %v90 = vpop.permute.xlu0 %89
    %v92 = vadd.f32 %v86, %v90
    %vm93 = vcmask 31744
    %v94 = vsel %vm93, %v81, %v92
    %96 = vrot.lane.b32.xlu0 %v63, 32
    %v97 = vpop.permute.xlu0 %96
    %v99 = vmul.f32 %v58, %v97
    %101 = vrot.lane.b32.xlu0 %v65, 36
    %v102 = vpop.permute.xlu0 %101
    %v104 = vmul.f32 %v58, %v102
    %106 = vrot.lane.b32.xlu0 %v104, 124
    %v107 = vpop.permute.xlu0 %106
    %v109 = vsub.f32 %v99, %v107
    %110 = vrot.lane.b32.xlu0 %v63, 36
    %v111 = vpop.permute.xlu0 %110
    %v113 = vmul.f32 %v58, %v111
    %114 = vrot.lane.b32.xlu0 %v65, 32
    %v115 = vpop.permute.xlu0 %114
    %v117 = vmul.f32 %v58, %v115
    %119 = vrot.lane.b32.xlu0 %v117, 4
    %v120 = vpop.permute.xlu0 %119
    %v122 = vadd.f32 %v113, %v120
    %124 = vrot.lane.b32.xlu0 %v109, 96
    %v125 = vpop.permute.xlu0 %124
    %128 = vrot.lane.b32.xlu0 %v122, 96
    %v129 = vpop.permute.xlu0 %128
    %v131 = vsel %vm93, %v125, %v129
    %vm132 = vcmask 64512
    %133 = vst.msk [vmem:[#allocation4] sm:$0xff] %vm132, %v131
    %135 = vrot.lane.b32.xlu0 %v58, 64
    %v136 = vpop.permute.xlu0 %135
    %s138 = scalar_lea.vmem [#allocation4], 64
    %139 = vst.msk [vmem:[%s138] sm:$0xff] %vm132, %v136
    %v141 = vsel %vm132, %v94, 0
    %v144 = vsel %vm132, %v131, 0
    %146 = vmatpush.xpose.msra.mxu0 0.0
    %147 = vmatpush.xpose.msra.mxu0 0.0
    %148 = vmatpush.xpose.msra.mxu0 0.0
    %149 = vmatpush.xpose.msra.mxu0 0.0
    %150 = vmatpush.xpose.msra.mxu0 0.0
    %151 = vmatpush.xpose.msra.mxu0 0.0
    %152 = vmatpush.xpose.msra.mxu0 0.0
    %153 = vmatpush.xpose.msra.mxu0 0.0
    %154 = vmatpush.xpose.msra.mxu0 0.0
    %155 = vmatpush.xpose.msra.mxu0 0.0
    %156 = vmatpush.xpose.msra.mxu0 0.0
    %157 = vmatpush.xpose.msra.mxu0 0.0
    %158 = vmatpush.xpose.msra.mxu0 0.0
    %159 = vmatpush.xpose.msra.mxu0 0.0
    %160 = vmatpush.xpose.msra.mxu0 0.0
    %161 = vmatpush.xpose.msra.mxu0 %v144
    %162 = vmatmul.f32.gmra.mxu0 %v141
    %v163 = vpop.f32.mrf.mxu0
    %v164 = vadd.f32 %v70, %v163
    %165 = vdwg.mxu0
    %v166 = vsel %vm132, %v164, -inf
    %167 = vmax.xlane.f32.xlu0 %v166
    %v168 = vpop.xlane.xlu0 %167
    %v169 = vsub.f32 %v164, %v168
    %v170 = vmul.f32 %v169, 1.442695
    %v171 = vpow.pop %v170
    %v172 = vsel %vm132, %v171, 0.0
    %173 = vadd.xlane.f32.xlu0 %v172
    %v174 = vpop.xlane.xlu0 %173
    %v176 = vsel %vm132, %v171, 0
    %178 = vmatpush.msra.mxu0 0.0
    %179 = vmatpush.msra.mxu0 0.0
    %180 = vmatpush.msra.mxu0 0.0
    %181 = vmatpush.msra.mxu0 0.0
    %182 = vmatpush.msra.mxu0 0.0
    %183 = vmatpush.msra.mxu0 0.0
    %184 = vmatpush.msra.mxu0 0.0
    %185 = vmatpush.msra.mxu0 0.0
    %186 = vmatpush.msra.mxu0 0.0
    %187 = vmatpush.msra.mxu0 0.0
    %188 = vmatpush.msra.mxu0 0.0
    %189 = vmatpush.msra.mxu0 0.0
    %190 = vmatpush.msra.mxu0 0.0
    %191 = vmatpush.msra.mxu0 0.0
    %192 = vmatpush.msra.mxu0 0.0
    %193 = vmatpush.msra.mxu0 %v136
    %194 = vmatmul.f32.gmra.mxu0 %v176
    %v195 = vpop.f32.mrf.mxu0
    %v196 = vadd.f32 0.0, %v195
    %197 = vdwg.mxu0
    %v198 = vrcp.pop %v174
    %v199 = vmul.f32 %v196, %v198
    %200 = vrot.lane.b32.xlu0 %v67, 8
    %v201 = vpop.permute.xlu0 %200
    %v203 = vmul.f32 %v58, %v201
    %204 = vrot.lane.b32.xlu0 %v68, 12
    %v205 = vpop.permute.xlu0 %204
    %v207 = vmul.f32 %v58, %v205
    %209 = vrot.lane.b32.xlu0 %v207, 124
    %v210 = vpop.permute.xlu0 %209
    %v212 = vsub.f32 %v203, %v210
    %213 = vrot.lane.b32.xlu0 %v67, 12
    %v214 = vpop.permute.xlu0 %213
    %v216 = vmul.f32 %v58, %v214
    %217 = vrot.lane.b32.xlu0 %v68, 8
    %v218 = vpop.permute.xlu0 %217
    %v220 = vmul.f32 %v58, %v218
    %222 = vrot.lane.b32.xlu0 %v220, 4
    %v223 = vpop.permute.xlu0 %222
    %v225 = vadd.f32 %v216, %v223
    %227 = vrot.lane.b32.xlu0 %v212, 120
    %v228 = vpop.permute.xlu0 %227
    %231 = vrot.lane.b32.xlu0 %v225, 120
    %v232 = vpop.permute.xlu0 %231
    %v234 = vsel %vm93, %v228, %v232
    %235 = vrot.lane.b32.xlu0 %v63, 40
    %v236 = vpop.permute.xlu0 %235
    %v238 = vmul.f32 %v58, %v236
    %239 = vrot.lane.b32.xlu0 %v65, 44
    %v240 = vpop.permute.xlu0 %239
    %v242 = vmul.f32 %v58, %v240
    %244 = vrot.lane.b32.xlu0 %v242, 124
    %v245 = vpop.permute.xlu0 %244
    %v247 = vsub.f32 %v238, %v245
    %248 = vrot.lane.b32.xlu0 %v63, 44
    %v249 = vpop.permute.xlu0 %248
    %v251 = vmul.f32 %v58, %v249
    %252 = vrot.lane.b32.xlu0 %v65, 40
    %v253 = vpop.permute.xlu0 %252
    %v255 = vmul.f32 %v58, %v253
    %257 = vrot.lane.b32.xlu0 %v255, 4
    %v258 = vpop.permute.xlu0 %257
    %v260 = vadd.f32 %v251, %v258
    %262 = vrot.lane.b32.xlu0 %v247, 88
    %v263 = vpop.permute.xlu0 %262
    %266 = vrot.lane.b32.xlu0 %v260, 88
    %v267 = vpop.permute.xlu0 %266
    %v269 = vsel %vm93, %v263, %v267
    %s270 = scalar_lea.vmem [#allocation4], 8
    %271 = vst.msk [vmem:[%s270] sm:$0xff] %vm132, %v269
    %272 = vrot.lane.b32.xlu0 %v58, 56
    %v273 = vpop.permute.xlu0 %272
    %s275 = scalar_lea.vmem [#allocation4], 72
    %276 = vst.msk [vmem:[%s275] sm:$0xff] %vm132, %v273
    %v278 = vsel %vm132, %v234, 0
    %v281 = vsel %vm132, %v269, 0
    %283 = vmatpush.xpose.msra.mxu0 0.0
    %284 = vmatpush.xpose.msra.mxu0 0.0
    %285 = vmatpush.xpose.msra.mxu0 0.0
    %286 = vmatpush.xpose.msra.mxu0 0.0
    %287 = vmatpush.xpose.msra.mxu0 0.0
    %288 = vmatpush.xpose.msra.mxu0 0.0
    %289 = vmatpush.xpose.msra.mxu0 0.0
    %290 = vmatpush.xpose.msra.mxu0 0.0
    %291 = vmatpush.xpose.msra.mxu0 0.0
    %292 = vmatpush.xpose.msra.mxu0 0.0
    %293 = vmatpush.xpose.msra.mxu0 0.0
    %294 = vmatpush.xpose.msra.mxu0 0.0
    %295 = vmatpush.xpose.msra.mxu0 0.0
    %296 = vmatpush.xpose.msra.mxu0 0.0
    %297 = vmatpush.xpose.msra.mxu0 0.0
    %298 = vmatpush.xpose.msra.mxu0 %v281
    %299 = vmatmul.f32.gmra.mxu0 %v278
    %v300 = vpop.f32.mrf.mxu0
    %v301 = vadd.f32 %v70, %v300
    %302 = vdwg.mxu0
    %v303 = vsel %vm132, %v301, -inf
    %304 = vmax.xlane.f32.xlu0 %v303
    %v305 = vpop.xlane.xlu0 %304
    %v306 = vsub.f32 %v301, %v305
    %v307 = vmul.f32 %v306, 1.442695
    %v308 = vpow.pop %v307
    %v309 = vsel %vm132, %v308, 0.0
    %310 = vadd.xlane.f32.xlu0 %v309
    %v311 = vpop.xlane.xlu0 %310
    %v313 = vsel %vm132, %v308, 0
    %315 = vmatpush.msra.mxu0 0.0
    %316 = vmatpush.msra.mxu0 0.0
    %317 = vmatpush.msra.mxu0 0.0
    %318 = vmatpush.msra.mxu0 0.0
    %319 = vmatpush.msra.mxu0 0.0
    %320 = vmatpush.msra.mxu0 0.0
    %321 = vmatpush.msra.mxu0 0.0
    %322 = vmatpush.msra.mxu0 0.0
    %323 = vmatpush.msra.mxu0 0.0
    %324 = vmatpush.msra.mxu0 0.0
    %325 = vmatpush.msra.mxu0 0.0
    %326 = vmatpush.msra.mxu0 0.0
    %327 = vmatpush.msra.mxu0 0.0
    %328 = vmatpush.msra.mxu0 0.0
    %329 = vmatpush.msra.mxu0 0.0
    %330 = vmatpush.msra.mxu0 %v273
    %331 = vmatmul.f32.gmra.mxu0 %v313
    %v332 = vpop.f32.mrf.mxu0
    %v333 = vadd.f32 0.0, %v332
    %334 = vdwg.mxu0
    %v335 = vrcp.pop %v311
    %v336 = vmul.f32 %v333, %v335
    %337 = vrot.lane.b32.xlu0 %v67, 16
    %v338 = vpop.permute.xlu0 %337
    %v340 = vmul.f32 %v58, %v338
    %341 = vrot.lane.b32.xlu0 %v68, 20
    %v342 = vpop.permute.xlu0 %341
    %v344 = vmul.f32 %v58, %v342
    %346 = vrot.lane.b32.xlu0 %v344, 124
    %v347 = vpop.permute.xlu0 %346
    %v349 = vsub.f32 %v340, %v347
    %350 = vrot.lane.b32.xlu0 %v67, 20
    %v351 = vpop.permute.xlu0 %350
    %v353 = vmul.f32 %v58, %v351
    %354 = vrot.lane.b32.xlu0 %v68, 16
    %v355 = vpop.permute.xlu0 %354
    %v357 = vmul.f32 %v58, %v355
    %359 = vrot.lane.b32.xlu0 %v357, 4
    %v360 = vpop.permute.xlu0 %359
    %v362 = vadd.f32 %v353, %v360
    %364 = vrot.lane.b32.xlu0 %v349, 112
    %v365 = vpop.permute.xlu0 %364
    %368 = vrot.lane.b32.xlu0 %v362, 112
    %v369 = vpop.permute.xlu0 %368
    %v371 = vsel %vm93, %v365, %v369
    %372 = vrot.lane.b32.xlu0 %v63, 48
    %v373 = vpop.permute.xlu0 %372
    %v375 = vmul.f32 %v58, %v373
    %376 = vrot.lane.b32.xlu0 %v65, 52
    %v377 = vpop.permute.xlu0 %376
    %v379 = vmul.f32 %v58, %v377
    %381 = vrot.lane.b32.xlu0 %v379, 124
    %v382 = vpop.permute.xlu0 %381
    %v384 = vsub.f32 %v375, %v382
    %385 = vrot.lane.b32.xlu0 %v63, 52
    %v386 = vpop.permute.xlu0 %385
    %v388 = vmul.f32 %v58, %v386
    %389 = vrot.lane.b32.xlu0 %v65, 48
    %v390 = vpop.permute.xlu0 %389
    %v392 = vmul.f32 %v58, %v390
    %394 = vrot.lane.b32.xlu0 %v392, 4
    %v395 = vpop.permute.xlu0 %394
    %v397 = vadd.f32 %v388, %v395
    %399 = vrot.lane.b32.xlu0 %v384, 80
    %v400 = vpop.permute.xlu0 %399
    %403 = vrot.lane.b32.xlu0 %v397, 80
    %v404 = vpop.permute.xlu0 %403
    %v406 = vsel %vm93, %v400, %v404
    %s407 = scalar_lea.vmem [#allocation4], 16
    %408 = vst.msk [vmem:[%s407] sm:$0xff] %vm132, %v406
    %409 = vrot.lane.b32.xlu0 %v58, 48
    %v410 = vpop.permute.xlu0 %409
    %s412 = scalar_lea.vmem [#allocation4], 80
    %413 = vst.msk [vmem:[%s412] sm:$0xff] %vm132, %v410
    %v415 = vsel %vm132, %v371, 0
    %v418 = vsel %vm132, %v406, 0
    %420 = vmatpush.xpose.msra.mxu0 0.0
    %421 = vmatpush.xpose.msra.mxu0 0.0
    %422 = vmatpush.xpose.msra.mxu0 0.0
    %423 = vmatpush.xpose.msra.mxu0 0.0
    %424 = vmatpush.xpose.msra.mxu0 0.0
    %425 = vmatpush.xpose.msra.mxu0 0.0
    %426 = vmatpush.xpose.msra.mxu0 0.0
    %427 = vmatpush.xpose.msra.mxu0 0.0
    %428 = vmatpush.xpose.msra.mxu0 0.0
    %429 = vmatpush.xpose.msra.mxu0 0.0
    %430 = vmatpush.xpose.msra.mxu0 0.0
    %431 = vmatpush.xpose.msra.mxu0 0.0
    %432 = vmatpush.xpose.msra.mxu0 0.0
    %433 = vmatpush.xpose.msra.mxu0 0.0
    %434 = vmatpush.xpose.msra.mxu0 0.0
    %435 = vmatpush.xpose.msra.mxu0 %v418
    %436 = vmatmul.f32.gmra.mxu0 %v415
    %v437 = vpop.f32.mrf.mxu0
    %v438 = vadd.f32 %v70, %v437
    %439 = vdwg.mxu0
    %v440 = vsel %vm132, %v438, -inf
    %441 = vmax.xlane.f32.xlu0 %v440
    %v442 = vpop.xlane.xlu0 %441
    %v443 = vsub.f32 %v438, %v442
    %v444 = vmul.f32 %v443, 1.442695
    %v445 = vpow.pop %v444
    %v446 = vsel %vm132, %v445, 0.0
    %447 = vadd.xlane.f32.xlu0 %v446
    %v448 = vpop.xlane.xlu0 %447
    %v450 = vsel %vm132, %v445, 0
    %452 = vmatpush.msra.mxu0 0.0
    %453 = vmatpush.msra.mxu0 0.0
    %454 = vmatpush.msra.mxu0 0.0
    %455 = vmatpush.msra.mxu0 0.0
    %456 = vmatpush.msra.mxu0 0.0
    %457 = vmatpush.msra.mxu0 0.0
    %458 = vmatpush.msra.mxu0 0.0
    %459 = vmatpush.msra.mxu0 0.0
    %460 = vmatpush.msra.mxu0 0.0
    %461 = vmatpush.msra.mxu0 0.0
    %462 = vmatpush.msra.mxu0 0.0
    %463 = vmatpush.msra.mxu0 0.0
    %464 = vmatpush.msra.mxu0 0.0
    %465 = vmatpush.msra.mxu0 0.0
    %466 = vmatpush.msra.mxu0 0.0
    %467 = vmatpush.msra.mxu0 %v410
    %468 = vmatmul.f32.gmra.mxu0 %v450
    %v469 = vpop.f32.mrf.mxu0
    %v470 = vadd.f32 0.0, %v469
    %471 = vdwg.mxu0
    %v472 = vrcp.pop %v448
    %v473 = vmul.f32 %v470, %v472
    %474 = vrot.lane.b32.xlu0 %v67, 24
    %v475 = vpop.permute.xlu0 %474
    %v477 = vmul.f32 %v58, %v475
    %478 = vrot.lane.b32.xlu0 %v68, 28
    %v479 = vpop.permute.xlu0 %478
    %v481 = vmul.f32 %v58, %v479
    %483 = vrot.lane.b32.xlu0 %v481, 124
    %v484 = vpop.permute.xlu0 %483
    %v486 = vsub.f32 %v477, %v484
    %487 = vrot.lane.b32.xlu0 %v67, 28
    %v488 = vpop.permute.xlu0 %487
    %v490 = vmul.f32 %v58, %v488
    %491 = vrot.lane.b32.xlu0 %v68, 24
    %v492 = vpop.permute.xlu0 %491
    %v494 = vmul.f32 %v58, %v492
    %496 = vrot.lane.b32.xlu0 %v494, 4
    %v497 = vpop.permute.xlu0 %496
    %v499 = vadd.f32 %v490, %v497
    %501 = vrot.lane.b32.xlu0 %v486, 104
    %v502 = vpop.permute.xlu0 %501
    %505 = vrot.lane.b32.xlu0 %v499, 104
    %v506 = vpop.permute.xlu0 %505
    %v508 = vsel %vm93, %v502, %v506
    %509 = vrot.lane.b32.xlu0 %v63, 56
    %v510 = vpop.permute.xlu0 %509
    %v512 = vmul.f32 %v58, %v510
    %513 = vrot.lane.b32.xlu0 %v65, 60
    %v514 = vpop.permute.xlu0 %513
    %v516 = vmul.f32 %v58, %v514
    %518 = vrot.lane.b32.xlu0 %v516, 124
    %v519 = vpop.permute.xlu0 %518
    %v521 = vsub.f32 %v512, %v519
    %522 = vrot.lane.b32.xlu0 %v63, 60
    %v523 = vpop.permute.xlu0 %522
    %v525 = vmul.f32 %v58, %v523
    %526 = vrot.lane.b32.xlu0 %v65, 56
    %v527 = vpop.permute.xlu0 %526
    %v529 = vmul.f32 %v58, %v527
    %531 = vrot.lane.b32.xlu0 %v529, 4
    %v532 = vpop.permute.xlu0 %531
    %v534 = vadd.f32 %v525, %v532
    %536 = vrot.lane.b32.xlu0 %v521, 72
    %v537 = vpop.permute.xlu0 %536
    %540 = vrot.lane.b32.xlu0 %v534, 72
    %v541 = vpop.permute.xlu0 %540
    %v543 = vsel %vm93, %v537, %v541
    %s544 = scalar_lea.vmem [#allocation4], 24
    %545 = vst.msk [vmem:[%s544] sm:$0xff] %vm132, %v543
    %546 = vrot.lane.b32.xlu0 %v58, 40
    %v547 = vpop.permute.xlu0 %546
    %s549 = scalar_lea.vmem [#allocation4], 88
    %550 = vst.msk [vmem:[%s549] sm:$0xff] %vm132, %v547
    %v552 = vsel %vm132, %v508, 0
    %v555 = vsel %vm132, %v543, 0
    %557 = vmatpush.xpose.msra.mxu0 0.0
    %558 = vmatpush.xpose.msra.mxu0 0.0
    %559 = vmatpush.xpose.msra.mxu0 0.0
    %560 = vmatpush.xpose.msra.mxu0 0.0
    %561 = vmatpush.xpose.msra.mxu0 0.0
    %562 = vmatpush.xpose.msra.mxu0 0.0
    %563 = vmatpush.xpose.msra.mxu0 0.0
    %564 = vmatpush.xpose.msra.mxu0 0.0
    %565 = vmatpush.xpose.msra.mxu0 0.0
    %566 = vmatpush.xpose.msra.mxu0 0.0
    %567 = vmatpush.xpose.msra.mxu0 0.0
    %568 = vmatpush.xpose.msra.mxu0 0.0
    %569 = vmatpush.xpose.msra.mxu0 0.0
    %570 = vmatpush.xpose.msra.mxu0 0.0
    %571 = vmatpush.xpose.msra.mxu0 0.0
    %572 = vmatpush.xpose.msra.mxu0 %v555
    %573 = vmatmul.f32.gmra.mxu0 %v552
    %v574 = vpop.f32.mrf.mxu0
    %v575 = vadd.f32 %v70, %v574
    %576 = vdwg.mxu0
    %v577 = vsel %vm132, %v575, -inf
    %578 = vmax.xlane.f32.xlu0 %v577
    %v579 = vpop.xlane.xlu0 %578
    %v580 = vsub.f32 %v575, %v579
    %v581 = vmul.f32 %v580, 1.442695
    %v582 = vpow.pop %v581
    %v583 = vsel %vm132, %v582, 0.0
    %584 = vadd.xlane.f32.xlu0 %v583
    %v585 = vpop.xlane.xlu0 %584
    %v587 = vsel %vm132, %v582, 0
    %589 = vmatpush.msra.mxu0 0.0
    %590 = vmatpush.msra.mxu0 0.0
    %591 = vmatpush.msra.mxu0 0.0
    %592 = vmatpush.msra.mxu0 0.0
    %593 = vmatpush.msra.mxu0 0.0
    %594 = vmatpush.msra.mxu0 0.0
    %595 = vmatpush.msra.mxu0 0.0
    %596 = vmatpush.msra.mxu0 0.0
    %597 = vmatpush.msra.mxu0 0.0
    %598 = vmatpush.msra.mxu0 0.0
    %599 = vmatpush.msra.mxu0 0.0
    %600 = vmatpush.msra.mxu0 0.0
    %601 = vmatpush.msra.mxu0 0.0
    %602 = vmatpush.msra.mxu0 0.0
    %603 = vmatpush.msra.mxu0 0.0
    %604 = vmatpush.msra.mxu0 %v547
    %605 = vmatmul.f32.gmra.mxu0 %v587
    %v606 = vpop.f32.mrf.mxu0
    %v607 = vadd.f32 0.0, %v606
    %608 = vdwg.mxu0
    %v609 = vrcp.pop %v585
    %v610 = vmul.f32 %v607, %v609
    %612 = vrot.lane.b32.xlu0 %v336, 8
    %v613 = vpop.permute.xlu0 %612
    %616 = vrot.lane.b32.xlu0 %v473, 16
    %v617 = vpop.permute.xlu0 %616
    %620 = vrot.lane.b32.xlu0 %v610, 24
    %v621 = vpop.permute.xlu0 %620
    %v623 = vsel %vm132, %v199, %v613
    %vm624 = vcmask 130048
    %v625 = vsel %vm624, %v623, %v617
    %vm626 = vcmask 195584
    %v627 = vsel %vm626, %v625, %v621
    %v628 = vmul.f32 %v64, 0.35355338
    %v629 = vmul.f32 %v66, 0.35355338
    %s630 = scalar_lea.vmem %s5, 8
    %v631 = vld [vmem:[%s630] sm:$0xff]
    %v632 = vmax.f32 %v631, -3.4028235e+38
    %v633 = vmul.f32 %v61, %v628
    %635 = vrot.lane.b32.xlu0 %v629, 4
    %v636 = vpop.permute.xlu0 %635
    %v638 = vmul.f32 %v61, %v636
    %640 = vrot.lane.b32.xlu0 %v638, 124
    %v641 = vpop.permute.xlu0 %640
    %v643 = vsub.f32 %v633, %v641
    %645 = vrot.lane.b32.xlu0 %v628, 4
    %v646 = vpop.permute.xlu0 %645
    %v648 = vmul.f32 %v61, %v646
    %v649 = vmul.f32 %v61, %v629
    %651 = vrot.lane.b32.xlu0 %v649, 4
    %v652 = vpop.permute.xlu0 %651
    %v654 = vadd.f32 %v648, %v652
    %v655 = vsel %vm93, %v643, %v654
    %657 = vrot.lane.b32.xlu0 %v64, 32
    %v658 = vpop.permute.xlu0 %657
    %v660 = vmul.f32 %v61, %v658
    %662 = vrot.lane.b32.xlu0 %v66, 36
    %v663 = vpop.permute.xlu0 %662
    %v665 = vmul.f32 %v61, %v663
    %667 = vrot.lane.b32.xlu0 %v665, 124
    %v668 = vpop.permute.xlu0 %667
    %v670 = vsub.f32 %v660, %v668
    %671 = vrot.lane.b32.xlu0 %v64, 36
    %v672 = vpop.permute.xlu0 %671
    %v674 = vmul.f32 %v61, %v672
    %675 = vrot.lane.b32.xlu0 %v66, 32
    %v676 = vpop.permute.xlu0 %675
    %v678 = vmul.f32 %v61, %v676
    %680 = vrot.lane.b32.xlu0 %v678, 4
    %v681 = vpop.permute.xlu0 %680
    %v683 = vadd.f32 %v674, %v681
    %685 = vrot.lane.b32.xlu0 %v670, 96
    %v686 = vpop.permute.xlu0 %685
    %689 = vrot.lane.b32.xlu0 %v683, 96
    %v690 = vpop.permute.xlu0 %689
    %v692 = vsel %vm93, %v686, %v690
    %s693 = scalar_lea.vmem [#allocation4], 32
    %694 = vst.msk [vmem:[%s693] sm:$0xff] %vm132, %v692
    %696 = vrot.lane.b32.xlu0 %v61, 64
    %v697 = vpop.permute.xlu0 %696
    %s699 = scalar_lea.vmem [#allocation4], 96
    %700 = vst.msk [vmem:[%s699] sm:$0xff] %vm132, %v697
    %v702 = vsel %vm132, %v655, 0
    %v705 = vsel %vm132, %v692, 0
    %707 = vmatpush.xpose.msra.mxu0 0.0
    %708 = vmatpush.xpose.msra.mxu0 0.0
    %709 = vmatpush.xpose.msra.mxu0 0.0
    %710 = vmatpush.xpose.msra.mxu0 0.0
    %711 = vmatpush.xpose.msra.mxu0 0.0
    %712 = vmatpush.xpose.msra.mxu0 0.0
    %713 = vmatpush.xpose.msra.mxu0 0.0
    %714 = vmatpush.xpose.msra.mxu0 0.0
    %715 = vmatpush.xpose.msra.mxu0 0.0
    %716 = vmatpush.xpose.msra.mxu0 0.0
    %717 = vmatpush.xpose.msra.mxu0 0.0
    %718 = vmatpush.xpose.msra.mxu0 0.0
    %719 = vmatpush.xpose.msra.mxu0 0.0
    %720 = vmatpush.xpose.msra.mxu0 0.0
    %721 = vmatpush.xpose.msra.mxu0 0.0
    %722 = vmatpush.xpose.msra.mxu0 %v705
    %723 = vmatmul.f32.gmra.mxu0 %v702
    %v724 = vpop.f32.mrf.mxu0
    %v725 = vadd.f32 %v632, %v724
    %726 = vdwg.mxu0
    %v727 = vsel %vm132, %v725, -inf
    %728 = vmax.xlane.f32.xlu0 %v727
    %v729 = vpop.xlane.xlu0 %728
    %v730 = vsub.f32 %v725, %v729
    %v731 = vmul.f32 %v730, 1.442695
    %v732 = vpow.pop %v731
    %v733 = vsel %vm132, %v732, 0.0
    %734 = vadd.xlane.f32.xlu0 %v733
    %v735 = vpop.xlane.xlu0 %734
    %v737 = vsel %vm132, %v732, 0
    %739 = vmatpush.msra.mxu0 0.0
    %740 = vmatpush.msra.mxu0 0.0
    %741 = vmatpush.msra.mxu0 0.0
    %742 = vmatpush.msra.mxu0 0.0
    %743 = vmatpush.msra.mxu0 0.0
    %744 = vmatpush.msra.mxu0 0.0
    %745 = vmatpush.msra.mxu0 0.0
    %746 = vmatpush.msra.mxu0 0.0
    %747 = vmatpush.msra.mxu0 0.0
    %748 = vmatpush.msra.mxu0 0.0
    %749 = vmatpush.msra.mxu0 0.0
    %750 = vmatpush.msra.mxu0 0.0
    %751 = vmatpush.msra.mxu0 0.0
    %752 = vmatpush.msra.mxu0 0.0
    %753 = vmatpush.msra.mxu0 0.0
    %754 = vmatpush.msra.mxu0 %v697
    %755 = vmatmul.f32.gmra.mxu0 %v737
    %v756 = vpop.f32.mrf.mxu0
    %v757 = vadd.f32 0.0, %v756
    %758 = vdwg.mxu0
    %v759 = vrcp.pop %v735
    %v760 = vmul.f32 %v757, %v759
    %761 = vrot.lane.b32.xlu0 %v628, 8
    %v762 = vpop.permute.xlu0 %761
    %v764 = vmul.f32 %v61, %v762
    %765 = vrot.lane.b32.xlu0 %v629, 12
    %v766 = vpop.permute.xlu0 %765
    %v768 = vmul.f32 %v61, %v766
    %770 = vrot.lane.b32.xlu0 %v768, 124
    %v771 = vpop.permute.xlu0 %770
    %v773 = vsub.f32 %v764, %v771
    %774 = vrot.lane.b32.xlu0 %v628, 12
    %v775 = vpop.permute.xlu0 %774
    %v777 = vmul.f32 %v61, %v775
    %778 = vrot.lane.b32.xlu0 %v629, 8
    %v779 = vpop.permute.xlu0 %778
    %v781 = vmul.f32 %v61, %v779
    %783 = vrot.lane.b32.xlu0 %v781, 4
    %v784 = vpop.permute.xlu0 %783
    %v786 = vadd.f32 %v777, %v784
    %788 = vrot.lane.b32.xlu0 %v773, 120
    %v789 = vpop.permute.xlu0 %788
    %792 = vrot.lane.b32.xlu0 %v786, 120
    %v793 = vpop.permute.xlu0 %792
    %v795 = vsel %vm93, %v789, %v793
    %796 = vrot.lane.b32.xlu0 %v64, 40
    %v797 = vpop.permute.xlu0 %796
    %v799 = vmul.f32 %v61, %v797
    %800 = vrot.lane.b32.xlu0 %v66, 44
    %v801 = vpop.permute.xlu0 %800
    %v803 = vmul.f32 %v61, %v801
    %805 = vrot.lane.b32.xlu0 %v803, 124
    %v806 = vpop.permute.xlu0 %805
    %v808 = vsub.f32 %v799, %v806
    %809 = vrot.lane.b32.xlu0 %v64, 44
    %v810 = vpop.permute.xlu0 %809
    %v812 = vmul.f32 %v61, %v810
    %813 = vrot.lane.b32.xlu0 %v66, 40
    %v814 = vpop.permute.xlu0 %813
    %v816 = vmul.f32 %v61, %v814
    %818 = vrot.lane.b32.xlu0 %v816, 4
    %v819 = vpop.permute.xlu0 %818
    %v821 = vadd.f32 %v812, %v819
    %823 = vrot.lane.b32.xlu0 %v808, 88
    %v824 = vpop.permute.xlu0 %823
    %827 = vrot.lane.b32.xlu0 %v821, 88
    %v828 = vpop.permute.xlu0 %827
    %v830 = vsel %vm93, %v824, %v828
    %s831 = scalar_lea.vmem [#allocation4], 40
    %832 = vst.msk [vmem:[%s831] sm:$0xff] %vm132, %v830
    %833 = vrot.lane.b32.xlu0 %v61, 56
    %v834 = vpop.permute.xlu0 %833
    %s836 = scalar_lea.vmem [#allocation4], 104
    %837 = vst.msk [vmem:[%s836] sm:$0xff] %vm132, %v834
    %v839 = vsel %vm132, %v795, 0
    %v842 = vsel %vm132, %v830, 0
    %844 = vmatpush.xpose.msra.mxu0 0.0
    %845 = vmatpush.xpose.msra.mxu0 0.0
    %846 = vmatpush.xpose.msra.mxu0 0.0
    %847 = vmatpush.xpose.msra.mxu0 0.0
    %848 = vmatpush.xpose.msra.mxu0 0.0
    %849 = vmatpush.xpose.msra.mxu0 0.0
    %850 = vmatpush.xpose.msra.mxu0 0.0
    %851 = vmatpush.xpose.msra.mxu0 0.0
    %852 = vmatpush.xpose.msra.mxu0 0.0
    %853 = vmatpush.xpose.msra.mxu0 0.0
    %854 = vmatpush.xpose.msra.mxu0 0.0
    %855 = vmatpush.xpose.msra.mxu0 0.0
    %856 = vmatpush.xpose.msra.mxu0 0.0
    %857 = vmatpush.xpose.msra.mxu0 0.0
    %858 = vmatpush.xpose.msra.mxu0 0.0
    %859 = vmatpush.xpose.msra.mxu0 %v842
    %860 = vmatmul.f32.gmra.mxu0 %v839
    %v861 = vpop.f32.mrf.mxu0
    %v862 = vadd.f32 %v632, %v861
    %863 = vdwg.mxu0
    %v864 = vsel %vm132, %v862, -inf
    %865 = vmax.xlane.f32.xlu0 %v864
    %v866 = vpop.xlane.xlu0 %865
    %v867 = vsub.f32 %v862, %v866
    %v868 = vmul.f32 %v867, 1.442695
    %v869 = vpow.pop %v868
    %v870 = vsel %vm132, %v869, 0.0
    %871 = vadd.xlane.f32.xlu0 %v870
    %v872 = vpop.xlane.xlu0 %871
    %v874 = vsel %vm132, %v869, 0
    %876 = vmatpush.msra.mxu0 0.0
    %877 = vmatpush.msra.mxu0 0.0
    %878 = vmatpush.msra.mxu0 0.0
    %879 = vmatpush.msra.mxu0 0.0
    %880 = vmatpush.msra.mxu0 0.0
    %881 = vmatpush.msra.mxu0 0.0
    %882 = vmatpush.msra.mxu0 0.0
    %883 = vmatpush.msra.mxu0 0.0
    %884 = vmatpush.msra.mxu0 0.0
    %885 = vmatpush.msra.mxu0 0.0
    %886 = vmatpush.msra.mxu0 0.0
    %887 = vmatpush.msra.mxu0 0.0
    %888 = vmatpush.msra.mxu0 0.0
    %889 = vmatpush.msra.mxu0 0.0
    %890 = vmatpush.msra.mxu0 0.0
    %891 = vmatpush.msra.mxu0 %v834
    %892 = vmatmul.f32.gmra.mxu0 %v874
    %v893 = vpop.f32.mrf.mxu0
    %v894 = vadd.f32 0.0, %v893
    %895 = vdwg.mxu0
    %v896 = vrcp.pop %v872
    %v897 = vmul.f32 %v894, %v896
    %898 = vrot.lane.b32.xlu0 %v628, 16
    %v899 = vpop.permute.xlu0 %898
    %v901 = vmul.f32 %v61, %v899
    %902 = vrot.lane.b32.xlu0 %v629, 20
    %v903 = vpop.permute.xlu0 %902
    %v905 = vmul.f32 %v61, %v903
    %907 = vrot.lane.b32.xlu0 %v905, 124
    %v908 = vpop.permute.xlu0 %907
    %v910 = vsub.f32 %v901, %v908
    %911 = vrot.lane.b32.xlu0 %v628, 20
    %v912 = vpop.permute.xlu0 %911
    %v914 = vmul.f32 %v61, %v912
    %915 = vrot.lane.b32.xlu0 %v629, 16
    %v916 = vpop.permute.xlu0 %915
    %v918 = vmul.f32 %v61, %v916
    %920 = vrot.lane.b32.xlu0 %v918, 4
    %v921 = vpop.permute.xlu0 %920
    %v923 = vadd.f32 %v914, %v921
    %925 = vrot.lane.b32.xlu0 %v910, 112
    %v926 = vpop.permute.xlu0 %925
    %929 = vrot.lane.b32.xlu0 %v923, 112
    %v930 = vpop.permute.xlu0 %929
    %v932 = vsel %vm93, %v926, %v930
    %933 = vrot.lane.b32.xlu0 %v64, 48
    %v934 = vpop.permute.xlu0 %933
    %v936 = vmul.f32 %v61, %v934
    %937 = vrot.lane.b32.xlu0 %v66, 52
    %v938 = vpop.permute.xlu0 %937
    %v940 = vmul.f32 %v61, %v938
    %942 = vrot.lane.b32.xlu0 %v940, 124
    %v943 = vpop.permute.xlu0 %942
    %v945 = vsub.f32 %v936, %v943
    %946 = vrot.lane.b32.xlu0 %v64, 52
    %v947 = vpop.permute.xlu0 %946
    %v949 = vmul.f32 %v61, %v947
    %950 = vrot.lane.b32.xlu0 %v66, 48
    %v951 = vpop.permute.xlu0 %950
    %v953 = vmul.f32 %v61, %v951
    %955 = vrot.lane.b32.xlu0 %v953, 4
    %v956 = vpop.permute.xlu0 %955
    %v958 = vadd.f32 %v949, %v956
    %960 = vrot.lane.b32.xlu0 %v945, 80
    %v961 = vpop.permute.xlu0 %960
    %964 = vrot.lane.b32.xlu0 %v958, 80
    %v965 = vpop.permute.xlu0 %964
    %v967 = vsel %vm93, %v961, %v965
    %s968 = scalar_lea.vmem [#allocation4], 48
    %969 = vst.msk [vmem:[%s968] sm:$0xff] %vm132, %v967
    %970 = vrot.lane.b32.xlu0 %v61, 48
    %v971 = vpop.permute.xlu0 %970
    %s973 = scalar_lea.vmem [#allocation4], 112
    %974 = vst.msk [vmem:[%s973] sm:$0xff] %vm132, %v971
    %v976 = vsel %vm132, %v932, 0
    %v979 = vsel %vm132, %v967, 0
    %981 = vmatpush.xpose.msra.mxu0 0.0
    %982 = vmatpush.xpose.msra.mxu0 0.0
    %983 = vmatpush.xpose.msra.mxu0 0.0
    %984 = vmatpush.xpose.msra.mxu0 0.0
    %985 = vmatpush.xpose.msra.mxu0 0.0
    %986 = vmatpush.xpose.msra.mxu0 0.0
    %987 = vmatpush.xpose.msra.mxu0 0.0
    %988 = vmatpush.xpose.msra.mxu0 0.0
    %989 = vmatpush.xpose.msra.mxu0 0.0
    %990 = vmatpush.xpose.msra.mxu0 0.0
    %991 = vmatpush.xpose.msra.mxu0 0.0
    %992 = vmatpush.xpose.msra.mxu0 0.0
    %993 = vmatpush.xpose.msra.mxu0 0.0
    %994 = vmatpush.xpose.msra.mxu0 0.0
    %995 = vmatpush.xpose.msra.mxu0 0.0
    %996 = vmatpush.xpose.msra.mxu0 %v979
    %997 = vmatmul.f32.gmra.mxu0 %v976
    %v998 = vpop.f32.mrf.mxu0
    %v999 = vadd.f32 %v632, %v998
    %1000 = vdwg.mxu0
    %v1001 = vsel %vm132, %v999, -inf
    %1002 = vmax.xlane.f32.xlu0 %v1001
    %v1003 = vpop.xlane.xlu0 %1002
    %v1004 = vsub.f32 %v999, %v1003
    %v1005 = vmul.f32 %v1004, 1.442695
    %v1006 = vpow.pop %v1005
    %v1007 = vsel %vm132, %v1006, 0.0
    %1008 = vadd.xlane.f32.xlu0 %v1007
    %v1009 = vpop.xlane.xlu0 %1008
    %v1011 = vsel %vm132, %v1006, 0
    %1013 = vmatpush.msra.mxu0 0.0
    %1014 = vmatpush.msra.mxu0 0.0
    %1015 = vmatpush.msra.mxu0 0.0
    %1016 = vmatpush.msra.mxu0 0.0
    %1017 = vmatpush.msra.mxu0 0.0
    %1018 = vmatpush.msra.mxu0 0.0
    %1019 = vmatpush.msra.mxu0 0.0
    %1020 = vmatpush.msra.mxu0 0.0
    %1021 = vmatpush.msra.mxu0 0.0
    %1022 = vmatpush.msra.mxu0 0.0
    %1023 = vmatpush.msra.mxu0 0.0
    %1024 = vmatpush.msra.mxu0 0.0
    %1025 = vmatpush.msra.mxu0 0.0
    %1026 = vmatpush.msra.mxu0 0.0
    %1027 = vmatpush.msra.mxu0 0.0
    %1028 = vmatpush.msra.mxu0 %v971
    %1029 = vmatmul.f32.gmra.mxu0 %v1011
    %v1030 = vpop.f32.mrf.mxu0
    %v1031 = vadd.f32 0.0, %v1030
    %1032 = vdwg.mxu0
    %v1033 = vrcp.pop %v1009
    %v1034 = vmul.f32 %v1031, %v1033
    %1035 = vrot.lane.b32.xlu0 %v628, 24
    %v1036 = vpop.permute.xlu0 %1035
    %v1038 = vmul.f32 %v61, %v1036
    %1039 = vrot.lane.b32.xlu0 %v629, 28
    %v1040 = vpop.permute.xlu0 %1039
    %v1042 = vmul.f32 %v61, %v1040
    %1044 = vrot.lane.b32.xlu0 %v1042, 124
    %v1045 = vpop.permute.xlu0 %1044
    %v1047 = vsub.f32 %v1038, %v1045
    %1048 = vrot.lane.b32.xlu0 %v628, 28
    %v1049 = vpop.permute.xlu0 %1048
    %v1051 = vmul.f32 %v61, %v1049
    %1052 = vrot.lane.b32.xlu0 %v629, 24
    %v1053 = vpop.permute.xlu0 %1052
    %v1055 = vmul.f32 %v61, %v1053
    %1057 = vrot.lane.b32.xlu0 %v1055, 4
    %v1058 = vpop.permute.xlu0 %1057
    %v1060 = vadd.f32 %v1051, %v1058
    %1062 = vrot.lane.b32.xlu0 %v1047, 104
    %v1063 = vpop.permute.xlu0 %1062
    %1066 = vrot.lane.b32.xlu0 %v1060, 104
    %v1067 = vpop.permute.xlu0 %1066
    %v1069 = vsel %vm93, %v1063, %v1067
    %1070 = vrot.lane.b32.xlu0 %v64, 56
    %v1071 = vpop.permute.xlu0 %1070
    %v1073 = vmul.f32 %v61, %v1071
    %1074 = vrot.lane.b32.xlu0 %v66, 60
    %v1075 = vpop.permute.xlu0 %1074
    %v1077 = vmul.f32 %v61, %v1075
    %1079 = vrot.lane.b32.xlu0 %v1077, 124
    %v1080 = vpop.permute.xlu0 %1079
    %v1082 = vsub.f32 %v1073, %v1080
    %1083 = vrot.lane.b32.xlu0 %v64, 60
    %v1084 = vpop.permute.xlu0 %1083
    %v1086 = vmul.f32 %v61, %v1084
    %1087 = vrot.lane.b32.xlu0 %v66, 56
    %v1088 = vpop.permute.xlu0 %1087
    %v1090 = vmul.f32 %v61, %v1088
    %1092 = vrot.lane.b32.xlu0 %v1090, 4
    %v1093 = vpop.permute.xlu0 %1092
    %v1095 = vadd.f32 %v1086, %v1093
    %1097 = vrot.lane.b32.xlu0 %v1082, 72
    %v1098 = vpop.permute.xlu0 %1097
    %1101 = vrot.lane.b32.xlu0 %v1095, 72
    %v1102 = vpop.permute.xlu0 %1101
    %v1104 = vsel %vm93, %v1098, %v1102
    %s1105 = scalar_lea.vmem [#allocation4], 56
    %1106 = vst.msk [vmem:[%s1105] sm:$0xff] %vm132, %v1104
    %1107 = vrot.lane.b32.xlu0 %v61, 40
    %v1108 = vpop.permute.xlu0 %1107
    %s1110 = scalar_lea.vmem [#allocation4], 120
    %1111 = vst.msk [vmem:[%s1110] sm:$0xff] %vm132, %v1108
    %v1113 = vsel %vm132, %v1069, 0
    %v1116 = vsel %vm132, %v1104, 0
    %1118 = vmatpush.xpose.msra.mxu0 0.0
    %1119 = vmatpush.xpose.msra.mxu0 0.0
    %1120 = vmatpush.xpose.msra.mxu0 0.0
    %1121 = vmatpush.xpose.msra.mxu0 0.0
    %1122 = vmatpush.xpose.msra.mxu0 0.0
    %1123 = vmatpush.xpose.msra.mxu0 0.0
    %1124 = vmatpush.xpose.msra.mxu0 0.0
    %1125 = vmatpush.xpose.msra.mxu0 0.0
    %1126 = vmatpush.xpose.msra.mxu0 0.0
    %1127 = vmatpush.xpose.msra.mxu0 0.0
    %1128 = vmatpush.xpose.msra.mxu0 0.0
    %1129 = vmatpush.xpose.msra.mxu0 0.0
    %1130 = vmatpush.xpose.msra.mxu0 0.0
    %1131 = vmatpush.xpose.msra.mxu0 0.0
    %1132 = vmatpush.xpose.msra.mxu0 0.0
    %1133 = vmatpush.xpose.msra.mxu0 %v1116
    %1134 = vmatmul.f32.gmra.mxu0 %v1113
    %v1135 = vpop.f32.mrf.mxu0
    %v1136 = vadd.f32 %v632, %v1135
    %1137 = vdwg.mxu0
    %v1138 = vsel %vm132, %v1136, -inf
    %1139 = vmax.xlane.f32.xlu0 %v1138
    %v1140 = vpop.xlane.xlu0 %1139
    %v1141 = vsub.f32 %v1136, %v1140
    %v1142 = vmul.f32 %v1141, 1.442695
    %v1143 = vpow.pop %v1142
    %v1144 = vsel %vm132, %v1143, 0.0
    %1145 = vadd.xlane.f32.xlu0 %v1144
    %v1146 = vpop.xlane.xlu0 %1145
    %v1148 = vsel %vm132, %v1143, 0
    %1150 = vmatpush.msra.mxu0 0.0
    %1151 = vmatpush.msra.mxu0 0.0
    %1152 = vmatpush.msra.mxu0 0.0
    %1153 = vmatpush.msra.mxu0 0.0
    %1154 = vmatpush.msra.mxu0 0.0
    %1155 = vmatpush.msra.mxu0 0.0
    %1156 = vmatpush.msra.mxu0 0.0
    %1157 = vmatpush.msra.mxu0 0.0
    %1158 = vmatpush.msra.mxu0 0.0
    %1159 = vmatpush.msra.mxu0 0.0
    %1160 = vmatpush.msra.mxu0 0.0
    %1161 = vmatpush.msra.mxu0 0.0
    %1162 = vmatpush.msra.mxu0 0.0
    %1163 = vmatpush.msra.mxu0 0.0
    %1164 = vmatpush.msra.mxu0 0.0
    %1165 = vmatpush.msra.mxu0 %v1108
    %1166 = vmatmul.f32.gmra.mxu0 %v1148
    %v1167 = vpop.f32.mrf.mxu0
    %v1168 = vadd.f32 0.0, %v1167
    %1169 = vdwg.mxu0
    %v1170 = vrcp.pop %v1146
    %v1171 = vmul.f32 %v1168, %v1170
    %1173 = vrot.lane.b32.xlu0 %v897, 8
    %v1174 = vpop.permute.xlu0 %1173
    %1177 = vrot.lane.b32.xlu0 %v1034, 16
    %v1178 = vpop.permute.xlu0 %1177
    %1181 = vrot.lane.b32.xlu0 %v1171, 24
    %v1182 = vpop.permute.xlu0 %1181
    %v1184 = vsel %vm132, %v760, %v1174
    %v1185 = vsel %vm624, %v1184, %v1178
    %v1186 = vsel %vm626, %v1185, %v1182
    %v1187 = vld [vmem:[%s2] sm:$0xff]
    %v1188 = vld [vmem:[%s2 + $0x8] sm:$0xff]
    %v1189 = vld [vmem:[%s2 + $0x10] sm:$0xff]
    %v1190 = vld [vmem:[%s2 + $0x18] sm:$0xff]
    %v1192 = vsel %vm33, %v627, 0
    %v1195 = vsel %vm33, %v1186, 0
    %1197 = vmatpush.msra.mxu0 0.0
    %1198 = vmatpush.msra.mxu0 0.0
    %1199 = vmatpush.msra.mxu0 0.0
    %1200 = vmatpush.msra.mxu0 0.0
    %1201 = vmatpush.msra.mxu0 0.0
    %1202 = vmatpush.msra.mxu0 0.0
    %1203 = vmatpush.msra.mxu0 0.0
    %1204 = vmatpush.msra.mxu0 0.0
    %1205 = vmatpush.msra.mxu0 0.0
    %1206 = vmatpush.msra.mxu0 0.0
    %1207 = vmatpush.msra.mxu0 0.0
    %1208 = vmatpush.msra.mxu0 0.0
    %1209 = vmatpush.msra.mxu0 %v1190
    %1210 = vmatpush.msra.mxu0 %v1189
    %1211 = vmatpush.msra.mxu0 %v1188
    %1212 = vmatpush.msra.mxu0 %v1187
    %1213 = vmatmul.f32.gmra.mxu0 %v1192
    %v1214 = vpop.f32.mrf.mxu0
    %v1215 = vadd.f32 0.0, %v1214
    %1216 = vmatmul.f32.gmra.mxu0 %v1195
    %v1217 = vpop.f32.mrf.mxu0
    %v1218 = vadd.f32 0.0, %v1217
    %1219 = vdwg.mxu0
    %1220 = vst.msk [vmem:[#allocation2] sm:$0xff] %vm33, %v1215
    %1221 = vst.msk [vmem:[#allocation2 + $0x8] sm:$0xff] %vm33, %v1218
    // Predicated region
    $region26: #{fused_llama_attention.1} parent=1 // pred_check
      _
    $region27: #{fused_llama_attention.1} parent=1 // pred_check_branch
      %1223 = sbr.rel (0) target = $region29
    $region28: #{fused_llama_attention.1} parent=1 // pred_region
      %1225 = vsyncadd [#allocation3], 0
      %s1226 = sshll.u32 [#allocation2], 4
      %s1227 = int_to_ptr.vmem [resolvable:$true] %s1226
      %s1228 = sshll.u32 %s7, 4
      %s1229 = int_to_ptr.hbm [resolvable:$true] %s1228
      %1234 = dma.vmem_to_hbm [thread:$0]  %s1227, 256, %s1229, [#allocation3], 128, 128, 8
    $region29: #{fused_llama_attention.1} parent=1 // pred_fallthru
      _
    // Predicated region
    $region30: #{fused_llama_attention.1} parent=1 // pred_check
      _
    $region31: #{fused_llama_attention.1} parent=1 // pred_check_branch
      %1236 = sbr.rel (0) target = $region33
    $region32: #{fused_llama_attention.1} parent=1 // pred_region
      // Predicated region
      $region34: #{fused_llama_attention.1} parent=32 // pred_check
        _
      $region35: #{fused_llama_attention.1} parent=32 // pred_check_branch
        %1238 = sbr.rel (0) target = $region37
      $region36: #{fused_llama_attention.1} parent=32 // pred_region
        // Predicated region
        $region38: #{fused_llama_attention.1} parent=36 // pred_check
          _
        $region39: #{fused_llama_attention.1} parent=36 // pred_check_branch
          %1240 = sbr.rel (0) target = $region41
        $region40: #{fused_llama_attention.1} parent=36 // pred_region
          // Predicated region
          $region53: #{fused_llama_attention.1} parent=40 // pred_check
            _
          $region54: #{fused_llama_attention.1} parent=40 // pred_check_branch
            %1286 = sbr.rel (0) target = $region56
          $region55: #{fused_llama_attention.1} parent=40 // pred_region
            loop: start=0, step=1, limit=1
            $region57: #{fused_llama_attention.1} parent=55 // loop_pre_header
              _
            $region58: #{fused_llama_attention.1} parent=55 // loop_header
              %s1288 = sphi 0, %s1292
              %p1289 = scmp.ge.s32.totalorder %s1288, 1
              %s1293 = sphi [#allocation4], [#allocation4]
              %s1294 = sphi %s8, %s8
            $region59: #{fused_llama_attention.1} parent=55 // loop_header_branch
              %1291 = sbr.rel (%p1289) target = $region63
            $region60: #{fused_llama_attention.1} parent=55 // loop_body
              %v1295 = vld [vmem:[%s1293] sm:$0xff]
              %1296 = vst [vmem:[%s1294] sm:$0xff] %v1295
              %v1297 = vld [vmem:[%s1293 + $0x8] sm:$0xff]
              %1298 = vst [vmem:[%s1294 + $0x10] sm:$0xff] %v1297
              %v1299 = vld [vmem:[%s1293 + $0x10] sm:$0xff]
              %1300 = vst [vmem:[%s1294 + $0x20] sm:$0xff] %v1299
              %v1301 = vld [vmem:[%s1293 + $0x18] sm:$0xff]
              %1302 = vst [vmem:[%s1294 + $0x30] sm:$0xff] %v1301
              %v1303 = vld [vmem:[%s1293 + $0x20] sm:$0xff]
              %1304 = vst [vmem:[%s1294 + $0x40] sm:$0xff] %v1303
              %v1305 = vld [vmem:[%s1293 + $0x28] sm:$0xff]
              %1306 = vst [vmem:[%s1294 + $0x50] sm:$0xff] %v1305
              %v1307 = vld [vmem:[%s1293 + $0x30] sm:$0xff]
              %1308 = vst [vmem:[%s1294 + $0x60] sm:$0xff] %v1307
              %v1309 = vld [vmem:[%s1293 + $0x38] sm:$0xff]
              %1310 = vst [vmem:[%s1294 + $0x70] sm:$0xff] %v1309
              %v1311 = vld [vmem:[%s1293 + $0x40] sm:$0xff]
              %1312 = vst [vmem:[%s1294 + $0x80] sm:$0xff] %v1311
              %v1313 = vld [vmem:[%s1293 + $0x48] sm:$0xff]
              %1314 = vst [vmem:[%s1294 + $0x90] sm:$0xff] %v1313
              %v1315 = vld [vmem:[%s1293 + $0x50] sm:$0xff]
              %1316 = vst [vmem:[%s1294 + $0xa0] sm:$0xff] %v1315
              %v1317 = vld [vmem:[%s1293 + $0x58] sm:$0xff]
              %1318 = vst [vmem:[%s1294 + $0xb0] sm:$0xff] %v1317
              %v1319 = vld [vmem:[%s1293 + $0x60] sm:$0xff]
              %1320 = vst [vmem:[%s1294 + $0xc0] sm:$0xff] %v1319
              %v1321 = vld [vmem:[%s1293 + $0x68] sm:$0xff]
              %1322 = vst [vmem:[%s1294 + $0xd0] sm:$0xff] %v1321
              %v1323 = vld [vmem:[%s1293 + $0x70] sm:$0xff]
              %1324 = vst [vmem:[%s1294 + $0xe0] sm:$0xff] %v1323
              %v1325 = vld [vmem:[%s1293 + $0x78] sm:$0xff]
              %1326 = vst [vmem:[%s1294 + $0xf0] sm:$0xff] %v1325
            $region61: #{fused_llama_attention.1} parent=55 // loop_footer
              %s1292 = sadd.s32 1, %s1288
            $region62: #{fused_llama_attention.1} parent=55 // loop_footer_branch
              %1287 = sbr.rel target = $region58
            $region63: #{fused_llama_attention.1} parent=55 // loop_exit
              _
          $region56: #{fused_llama_attention.1} parent=40 // pred_fallthru
            _
          // Predicated region
          $region64: #{fused_llama_attention.1} parent=40 // pred_check
            _
          $region65: #{fused_llama_attention.1} parent=40 // pred_check_branch
            %1328 = sbr.rel target = $region67
          $region66: #{fused_llama_attention.1} parent=40 // pred_region
            _
          $region67: #{fused_llama_attention.1} parent=40 // pred_fallthru
            _
        $region41: #{fused_llama_attention.1} parent=36 // pred_fallthru
          _
        // Predicated region
        $region42: #{fused_llama_attention.1} parent=36 // pred_check
          _
        $region43: #{fused_llama_attention.1} parent=36 // pred_check_branch
          %1242 = sbr.rel target = $region45
        $region44: #{fused_llama_attention.1} parent=36 // pred_region
          %s1244 = ssub.s32 256, 1
          loop: start=0, step=1, limit=1
          $region46: #{fused_llama_attention.1} parent=44 // loop_pre_header
            _
          $region47: #{fused_llama_attention.1} parent=44 // loop_header
            %s1246 = sphi 0, %s1250
            %p1247 = scmp.ge.s32.totalorder %s1246, 1
            %s1251 = sphi [#allocation4], [#allocation4]
            %s1252 = sphi %s8, %s8
          $region48: #{fused_llama_attention.1} parent=44 // loop_header_branch
            %1249 = sbr.rel (%p1247) target = $region52
          $region49: #{fused_llama_attention.1} parent=44 // loop_body
            %v1253 = vld [vmem:[%s1251] sm:%s1244]
            %1254 = vst [vmem:[%s1252] sm:%s1244] %v1253
            %v1255 = vld [vmem:[%s1251 + $0x8] sm:%s1244]
            %1256 = vst [vmem:[%s1252 + $0x10] sm:%s1244] %v1255
            %v1257 = vld [vmem:[%s1251 + $0x10] sm:%s1244]
            %1258 = vst [vmem:[%s1252 + $0x20] sm:%s1244] %v1257
            %v1259 = vld [vmem:[%s1251 + $0x18] sm:%s1244]
            %1260 = vst [vmem:[%s1252 + $0x30] sm:%s1244] %v1259
            %v1261 = vld [vmem:[%s1251 + $0x20] sm:%s1244]
            %1262 = vst [vmem:[%s1252 + $0x40] sm:%s1244] %v1261
            %v1263 = vld [vmem:[%s1251 + $0x28] sm:%s1244]
            %1264 = vst [vmem:[%s1252 + $0x50] sm:%s1244] %v1263
            %v1265 = vld [vmem:[%s1251 + $0x30] sm:%s1244]
            %1266 = vst [vmem:[%s1252 + $0x60] sm:%s1244] %v1265
            %v1267 = vld [vmem:[%s1251 + $0x38] sm:%s1244]
            %1268 = vst [vmem:[%s1252 + $0x70] sm:%s1244] %v1267
            %v1269 = vld [vmem:[%s1251 + $0x40] sm:%s1244]
            %1270 = vst [vmem:[%s1252 + $0x80] sm:%s1244] %v1269
            %v1271 = vld [vmem:[%s1251 + $0x48] sm:%s1244]
            %1272 = vst [vmem:[%s1252 + $0x90] sm:%s1244] %v1271
            %v1273 = vld [vmem:[%s1251 + $0x50] sm:%s1244]
            %1274 = vst [vmem:[%s1252 + $0xa0] sm:%s1244] %v1273
            %v1275 = vld [vmem:[%s1251 + $0x58] sm:%s1244]
            %1276 = vst [vmem:[%s1252 + $0xb0] sm:%s1244] %v1275
            %v1277 = vld [vmem:[%s1251 + $0x60] sm:%s1244]
            %1278 = vst [vmem:[%s1252 + $0xc0] sm:%s1244] %v1277
            %v1279 = vld [vmem:[%s1251 + $0x68] sm:%s1244]
            %1280 = vst [vmem:[%s1252 + $0xd0] sm:%s1244] %v1279
            %v1281 = vld [vmem:[%s1251 + $0x70] sm:%s1244]
            %1282 = vst [vmem:[%s1252 + $0xe0] sm:%s1244] %v1281
            %v1283 = vld [vmem:[%s1251 + $0x78] sm:%s1244]
            %1284 = vst [vmem:[%s1252 + $0xf0] sm:%s1244] %v1283
          $region50: #{fused_llama_attention.1} parent=44 // loop_footer
            %s1250 = sadd.s32 1, %s1246
          $region51: #{fused_llama_attention.1} parent=44 // loop_footer_branch
            %1245 = sbr.rel target = $region47
          $region52: #{fused_llama_attention.1} parent=44 // loop_exit
            _
        $region45: #{fused_llama_attention.1} parent=36 // pred_fallthru
          _
      $region37: #{fused_llama_attention.1} parent=32 // pred_fallthru
        _
      %1329 = vnop
    $region33: #{fused_llama_attention.1} parent=1 // pred_fallthru
      _
    // Predicated region
    $region68: #{fused_llama_attention.1} parent=1 // pred_check
      _
    $region69: #{fused_llama_attention.1} parent=1 // pred_check_branch
      %1331 = sbr.rel (0) target = $region71
    $region70: #{fused_llama_attention.1} parent=1 // pred_region
      %1333 = dma.done [#allocation3], 256
    $region71: #{fused_llama_attention.1} parent=1 // pred_fallthru
      _
    // Predicated region
    $region72: #{fused_llama_attention.1} parent=1 // pred_check
      _
    $region73: #{fused_llama_attention.1} parent=1 // pred_check_branch
      %1335 = sbr.rel (0) target = $region75
    $region74: #{fused_llama_attention.1} parent=1 // pred_region
      _
    $region75: #{fused_llama_attention.1} parent=1 // pred_fallthru
      _
    %1336 = vsyncpa [#allocation3], 1

</llo_original>
